<compile_context>
chip_gen: v6e
topology: v6e:2x2x1
jax: 0.10.0
libtpu: 0.0.40
codegen_flags: <defaults>
</compile_context>

<pallas_src>
import numpy as np
import jax
import jax.numpy as jnp
from jax.experimental import pallas as pl
from jax.experimental.pallas import tpu as pltpu


# ----------------------------------------------------------------------------
# Fused Pallas kernel: conv (as dense matmul) + fc1 + concatenated fc2 heads.
# Only plain 2-D matmuls / broadcast adds / ReLUs -> no in-kernel relayouts.
# ----------------------------------------------------------------------------
def _fused_head_kernel(x_ref, t_ref, bt_ref, w1_ref, b1_ref, w2_ref, b2_ref,
                       o_ref):
    # x_ref : (TB, Cin*H*W)           f32 CHW-flattened input rows (batch tile)
    # t_ref : (Cin*H*W, Cout*H*W)     bf16 conv3x3 as dense Toeplitz matrix
    # bt_ref: (1, Cout*H*W)           f32 conv bias per CHW-flattened column
    # w1_ref: (Cout*H*W, FC_DIM)      bf16 shared fc1 (rows already CHW order)
    # b1_ref: (1, FC_DIM)             f32
    # w2_ref: (FC_DIM, 128)           bf16 per-head fc2 concatenated + zero-pad
    # b2_ref: (1, 128)                f32 (pad lanes are zero)
    # o_ref : (TB, 128)               f32 lane-dense output block

    # conv3x3 + bias + ReLU as ONE bf16 MXU matmul (padding folded into t_ref).
    a = jnp.dot(x_ref[...].astype(jnp.bfloat16), t_ref[...],
                preferred_element_type=jnp.float32)
    a = jnp.maximum(a + bt_ref[...], 0.0)                      # f32 VPU

    # shared fc1 + ReLU (flatten order already matches t_ref's column order).
    h = jnp.dot(a.astype(jnp.bfloat16), w1_ref[...],
                preferred_element_type=jnp.float32)
    h = jnp.maximum(h + b1_ref[...], 0.0)                      # f32 VPU

    # both head fc2 layers as one matmul (weights concatenated + lane-padded).
    y = jnp.dot(h.astype(jnp.bfloat16), w2_ref[...],
                preferred_element_type=jnp.float32)
    o_ref[...] = jnp.maximum(y + b2_ref[...], 0.0)             # unmasked 128-lane store


def _fused_pallas_call(x_flat, fp, *, single_buffer_weights=True):
    b, k = x_flat.shape
    dc = fp["T"].shape[1]
    d1 = fp["w1"].shape[1]
    d2p = fp["w2"].shape[1]          # lane-dense padded width (multiple of 128)

    # Batch-row tiling: whole batch in one block when small, 512-row tiles when
    # large (fills the 256-wide v6e/v7x MXU, amortizes per-step overhead, and
    # the "parallel" axis feeds both v7x TensorCores once B > tb).
    tb = b if b <= 512 else 512
    grid = (pl.cdiv(b, tb),)

    # Constant operands (block index never changes): single-buffer them so no
    # useless second VMEM copy / prefetch plumbing is allocated.
    w_mode = (pl.Buffered(1)
              if (single_buffer_weights and hasattr(pl, "Buffered")) else None)

    def wspec(shape):
        return pl.BlockSpec(shape, lambda i: (0, 0), pipeline_mode=w_mode)

    return pl.pallas_call(
        _fused_head_kernel,
        out_shape=jax.ShapeDtypeStruct((b, d2p), jnp.float32),
        grid_spec=pltpu.PrefetchScalarGridSpec(
            num_scalar_prefetch=0,
            grid=grid,
            in_specs=[
                pl.BlockSpec((tb, k), lambda i: (i, 0)),   # input rows
                wspec((k, dc)), wspec((1, dc)),            # conv-as-matrix, bias
                wspec((dc, d1)), wspec((1, d1)),           # fc1
                wspec((d1, d2p)), wspec((1, d2p)),         # concatenated+padded fc2
            ],
            out_specs=pl.BlockSpec((tb, d2p), lambda i: (i, 0)),
        ),
        compiler_params=pltpu.CompilerParams(
            dimension_semantics=("parallel",)),
    )(x_flat, fp["T"], fp["bT"], fp["w1"], fp["b1"], fp["w2"], fp["b2"])


# ----------------------------------------------------------------------------
# Init-time weight repacking (done once; pure host/numpy, no runtime cost).
# ----------------------------------------------------------------------------
def conv3x3_as_dense_matrix(w_hwio, cin, h, w):
    """Repack a 3x3 stride-1 pad-1 conv weight (3,3,Cin,Cout) into a dense
    matrix T of shape (Cin*H*W, Cout*H*W) such that

        x.reshape(B, Cin*H*W) @ T == conv2d_nchw(x, w, pad=1).reshape(B, -1)

    with BOTH flattens in torch/NCHW C*H*W order.  Zero padding shows up as
    structural zeros in T, so no padded activation copy is ever materialized."""
    wn = np.asarray(w_hwio, np.float32)           # (3, 3, Cin, Cout)
    cout = wn.shape[-1]
    t6 = np.zeros((cin, h, w, cout, h, w), np.float32)
    for kh in range(3):
        for kw in range(3):
            for oh in range(h):
                ih = oh + kh - 1
                if ih < 0 or ih >= h:
                    continue
                for ow in range(w):
                    iw = ow + kw - 1
                    if iw < 0 or iw >= w:
                        continue
                    # coefficient of x[:, ci, ih, iw] in y[:, co, oh, ow]
                    t6[:, ih, iw, :, oh, ow] = wn[kh, kw]
    return t6.reshape(cin * h * w, cout * h * w)


def prepare_fused_params(params, in_channels, height, width):
    """Fold conv->Toeplitz, flatten order, head concatenation, lane padding and
    the bf16 weight cast into the stored parameters."""
    assert len(params["convs"]) == 1, "fused kernel assumes NUM_CONV == 1"
    assert len(params["fcs"]) == 2, "fused kernel assumes NUM_FC == 2"
    assert len(params["fcs"][0]) == 1, "fused kernel assumes fc1 is shared"

    wc, bc = params["convs"][0]
    hw = height * width
    T = conv3x3_as_dense_matrix(wc, in_channels, height, width)
    bT = np.repeat(np.asarray(bc, np.float32), hw)[None, :]

    w1, b1 = params["fcs"][0][0]                   # rows already in CHW order
    w1 = np.asarray(w1, np.float32)
    assert w1.shape[0] == T.shape[1]

    heads = params["fcs"][1]
    w2 = np.concatenate([np.asarray(w, np.float32) for (w, _) in heads], axis=1)
    b2 = np.concatenate([np.asarray(b, np.float32) for (_, b) in heads], axis=0)

    # Lane-dense padding of the final matmul: pad Dout up to a multiple of 128
    # so the output store is unmasked; the zero columns are free on the MXU.
    d2 = w2.shape[1]
    d2p = ((d2 + 127) // 128) * 128
    w2 = np.pad(w2, ((0, 0), (0, d2p - d2)))
    b2 = np.pad(b2, ((0, d2p - d2),))

    return {
        "T": jnp.asarray(T, jnp.bfloat16),           # bf16 weights in HBM
        "bT": jnp.asarray(bT, jnp.float32),
        "w1": jnp.asarray(w1, jnp.bfloat16),
        "b1": jnp.asarray(np.asarray(b1, np.float32))[None, :],
        "w2": jnp.asarray(w2, jnp.bfloat16),
        "b2": jnp.asarray(b2, jnp.float32)[None, :],
    }


# ----------------------------------------------------------------------------
# Forward (mirrors FastRCNNConvFCMultiHead.forward).  Returns a single
# (B, num_heads, fc_dim) array; head i of the torch module's output list is
# out[:, i, :] (metadata-only view, no per-head HBM copies on the hot path).
# ----------------------------------------------------------------------------
def forward(fused_params, x_nchw, num_heads, fc_dim):
    b = x_nchw.shape[0]
    x_flat = x_nchw.reshape(b, -1)        # torch-style C*H*W flatten; metadata only
    try:
        out = _fused_pallas_call(x_flat, fused_params, single_buffer_weights=True)
    except Exception:
        # Compatibility fallback: if this jax/Mosaic build rejects Buffered(1)
        # on top-level BlockSpecs, rerun with default double-buffered weights.
        out = _fused_pallas_call(x_flat, fused_params, single_buffer_weights=False)
    d2 = num_heads * fc_dim
    # Strip the lane-padding once, then a metadata-only reshape to heads.
    return out[:, :d2].reshape(b, num_heads, fc_dim)


# ----------------------------------------------------------------------------
# Parameter construction (deterministic, mirrors FastRCNNConvFCMultiHead.__init__)
# ----------------------------------------------------------------------------
def build_params(key, in_channels, height, width, num_conv, conv_dim,
                 num_fc, fc_dim, num_heads, split_at_fc):
    assert num_heads > 0 and (num_heads == 1 or num_fc > 0)
    assert num_fc + num_conv > 0 and split_at_fc <= num_fc

    params = {"convs": [], "fcs": []}
    out_size = (in_channels, height, width)

    for _ in range(num_conv):
        key, kw_ = jax.random.split(key)
        cin = out_size[0]
        # c2_msra_fill ~ kaiming normal (fan_out), bias = 0 (norm="" -> bias=True)
        std = np.sqrt(2.0 / (conv_dim * 3 * 3))
        w = jax.random.normal(kw_, (3, 3, cin, conv_dim), jnp.float32) * std
        b = jnp.zeros((conv_dim,), jnp.float32)
        params["convs"].append((w, b))
        out_size = (conv_dim, out_size[1], out_size[2])

    out_feat = int(np.prod(out_size))
    for k in range(1, num_fc + 1):
        din = out_feat
        bound = np.sqrt(1.0 / din)
        if k >= split_at_fc and num_heads > 1:
            layers = []
            for _ in range(num_heads):
                key, kw_, kb_ = jax.random.split(key, 3)
                w = jax.random.uniform(kw_, (din, fc_dim), jnp.float32, -bound, bound)
                b = jax.random.uniform(kb_, (fc_dim,), jnp.float32, -bound, bound)
                layers.append((w, b))
            params["fcs"].append(layers)
            out_feat = num_heads * fc_dim
        else:
            key, kw_, kb_ = jax.random.split(key, 3)
            w = jax.random.uniform(kw_, (din, fc_dim), jnp.float32, -bound, bound)
            b = jax.random.uniform(kb_, (fc_dim,), jnp.float32, -bound, bound)
            params["fcs"].append([(w, b)])
            out_feat = fc_dim
    return params


# ----------------------------------------------------------------------------
# Pure-JAX reference (full f32 precision) for the correctness check.
# ----------------------------------------------------------------------------
def reference(params, x_nchw):
    x = x_nchw
    for (w, b) in params["convs"]:
        w_oihw = jnp.transpose(w, (3, 2, 0, 1))
        x = jax.lax.conv_general_dilated(
            x, w_oihw, window_strides=(1, 1), padding="SAME",
            dimension_numbers=("NCHW", "OIHW", "NCHW"),
            precision=jax.lax.Precision.HIGHEST)
        x = jnp.maximum(x + b.reshape(1, -1, 1, 1), 0.0)
    x = x.reshape(x.shape[0], -1)               # torch.flatten on NCHW
    inputs = [x]
    outputs = None
    for layers in params["fcs"]:
        if len(layers) > len(inputs):
            inputs = (len(layers) // len(inputs)) * inputs
        outputs = [jnp.maximum(
            jnp.dot(inp, w, precision=jax.lax.Precision.HIGHEST) + b, 0.0)
            for (w, b), inp in zip(layers, inputs)]
        inputs = outputs
    return outputs


if __name__ == "__main__":
    # Small, deterministic example consistent with the module's forward.
    N, C, H, W = 2, 4, 8, 8
    NUM_CONV, CONV_DIM = 1, 8
    NUM_FC, FC_DIM = 2, 32
    NUM_HEADS, SPLIT_AT_FC = 2, 2

    key = jax.random.PRNGKey(0)
    key, kx = jax.random.split(key)
    x = jax.random.normal(kx, (N, C, H, W), jnp.float32)

    params = build_params(key, C, H, W, NUM_CONV, CONV_DIM,
                          NUM_FC, FC_DIM, NUM_HEADS, SPLIT_AT_FC)
    fused = prepare_fused_params(params, C, H, W)

    out = forward(fused, x, NUM_HEADS, FC_DIM)        # (N, NUM_HEADS, FC_DIM)
    out = jax.block_until_ready(out)
    assert out.shape == (N, NUM_HEADS, FC_DIM)

    refs = reference(params, x)
    out_np = np.asarray(out)
    assert len(refs) == NUM_HEADS
    for i, r in enumerate(refs):
        assert r.shape == (N, FC_DIM)
        # bf16 matmul operands (f32 accumulation) vs f32-HIGHEST reference:
        # deliberate accuracy/perf trade-off, tolerance relaxed accordingly.
        np.testing.assert_allclose(out_np[:, i, :], np.asarray(r),
                                   rtol=2e-2, atol=2e-2)

    print("KERNEL_OK")
</pallas_src>

<mosaic_0001>
module attributes {stable_mosaic.version = 11 : i64} {
  func.func @_fused_head_kernel(%arg0: i32, %arg1: memref<2x256xf32, #tpu.memory_space<vmem>>, %arg2: memref<256x512xbf16, #tpu.memory_space<vmem>>, %arg3: memref<1x512xf32, #tpu.memory_space<vmem>>, %arg4: memref<512x32xbf16, #tpu.memory_space<vmem>>, %arg5: memref<1x32xf32, #tpu.memory_space<vmem>>, %arg6: memref<32x128xbf16, #tpu.memory_space<vmem>>, %arg7: memref<1x128xf32, #tpu.memory_space<vmem>>, %arg8: memref<2x128xf32, #tpu.memory_space<vmem>>) attributes {dimension_semantics = [#tpu.dimension_semantics<parallel>], iteration_bounds = array<i64: 1>, scalar_prefetch = 0 : i64, scratch_operands = 0 : i64, tpu.core_type = #tpu.core_type<tc>, window_params = [{transform_indices = @transform_0, window_bounds = array<i64: 2, 256>}, {pipeline_mode = #tpu.pipeline_mode<synchronous>, transform_indices = @transform_1, window_bounds = array<i64: 256, 512>}, {pipeline_mode = #tpu.pipeline_mode<synchronous>, transform_indices = @transform_2, window_bounds = array<i64: 1, 512>}, {pipeline_mode = #tpu.pipeline_mode<synchronous>, transform_indices = @transform_3, window_bounds = array<i64: 512, 32>}, {pipeline_mode = #tpu.pipeline_mode<synchronous>, transform_indices = @transform_4, window_bounds = array<i64: 1, 32>}, {pipeline_mode = #tpu.pipeline_mode<synchronous>, transform_indices = @transform_5, window_bounds = array<i64: 32, 128>}, {pipeline_mode = #tpu.pipeline_mode<synchronous>, transform_indices = @transform_6, window_bounds = array<i64: 1, 128>}, {transform_indices = @transform_7, window_bounds = array<i64: 2, 128>}]} {
    %c0 = arith.constant 0 : index
    %c0_0 = arith.constant 0 : index
    %0 = vector.load %arg1[%c0, %c0_0] : memref<2x256xf32, #tpu.memory_space<vmem>>, vector<2x256xf32>
    %1 = arith.truncf %0 : vector<2x256xf32> to vector<2x256xbf16>
    %c0_1 = arith.constant 0 : index
    %c0_2 = arith.constant 0 : index
    %2 = vector.load %arg2[%c0_1, %c0_2] : memref<256x512xbf16, #tpu.memory_space<vmem>>, vector<256x512xbf16>
    %cst = arith.constant dense<0.000000e+00> : vector<2x512xf32>
    %3 = tpu.matmul %1, %2, %cst {dimension_numbers = #tpu.dot_dimension_numbers<[1], [0], [0], [1], [0, 0, 1, 1], [], []>} : vector<2x256xbf16>, vector<256x512xbf16>, vector<2x512xf32> -> vector<2x512xf32>
    %c0_3 = arith.constant 0 : index
    %c0_4 = arith.constant 0 : index
    %4 = vector.load %arg3[%c0_3, %c0_4] : memref<1x512xf32, #tpu.memory_space<vmem>>, vector<1x512xf32>
    %5 = vector.broadcast %4 : vector<1x512xf32> to vector<2x512xf32>
    %6 = arith.addf %3, %5 : vector<2x512xf32>
    %cst_5 = arith.constant 0.000000e+00 : f32
    %7 = vector.broadcast %cst_5 : f32 to vector<2x512xf32>
    %8 = arith.maximumf %6, %7 : vector<2x512xf32>
    %9 = arith.truncf %8 : vector<2x512xf32> to vector<2x512xbf16>
    %c0_6 = arith.constant 0 : index
    %c0_7 = arith.constant 0 : index
    %10 = vector.load %arg4[%c0_6, %c0_7] : memref<512x32xbf16, #tpu.memory_space<vmem>>, vector<512x32xbf16>
    %cst_8 = arith.constant dense<0.000000e+00> : vector<2x32xf32>
    %11 = tpu.matmul %9, %10, %cst_8 {dimension_numbers = #tpu.dot_dimension_numbers<[1], [0], [0], [1], [0, 0, 1, 1], [], []>} : vector<2x512xbf16>, vector<512x32xbf16>, vector<2x32xf32> -> vector<2x32xf32>
    %c0_9 = arith.constant 0 : index
    %c0_10 = arith.constant 0 : index
    %12 = vector.load %arg5[%c0_9, %c0_10] : memref<1x32xf32, #tpu.memory_space<vmem>>, vector<1x32xf32>
    %13 = vector.broadcast %12 : vector<1x32xf32> to vector<2x32xf32>
    %14 = arith.addf %11, %13 : vector<2x32xf32>
    %cst_11 = arith.constant 0.000000e+00 : f32
    %15 = vector.broadcast %cst_11 : f32 to vector<2x32xf32>
    %16 = arith.maximumf %14, %15 : vector<2x32xf32>
    %17 = arith.truncf %16 : vector<2x32xf32> to vector<2x32xbf16>
    %c0_12 = arith.constant 0 : index
    %c0_13 = arith.constant 0 : index
    %18 = vector.load %arg6[%c0_12, %c0_13] : memref<32x128xbf16, #tpu.memory_space<vmem>>, vector<32x128xbf16>
    %cst_14 = arith.constant dense<0.000000e+00> : vector<2x128xf32>
    %19 = tpu.matmul %17, %18, %cst_14 {dimension_numbers = #tpu.dot_dimension_numbers<[1], [0], [0], [1], [0, 0, 1, 1], [], []>} : vector<2x32xbf16>, vector<32x128xbf16>, vector<2x128xf32> -> vector<2x128xf32>
    %c0_15 = arith.constant 0 : index
    %c0_16 = arith.constant 0 : index
    %20 = vector.load %arg7[%c0_15, %c0_16] : memref<1x128xf32, #tpu.memory_space<vmem>>, vector<1x128xf32>
    %21 = vector.broadcast %20 : vector<1x128xf32> to vector<2x128xf32>
    %22 = arith.addf %19, %21 : vector<2x128xf32>
    %cst_17 = arith.constant 0.000000e+00 : f32
    %23 = vector.broadcast %cst_17 : f32 to vector<2x128xf32>
    %24 = arith.maximumf %22, %23 : vector<2x128xf32>
    %c0_18 = arith.constant 0 : index
    %c0_19 = arith.constant 0 : index
    %25 = vector.load %arg8[%c0_18, %c0_19] : memref<2x128xf32, #tpu.memory_space<vmem>>, vector<2x128xf32>
    tpu.vector_store %arg8[%c0_18, %c0_19], %24 {strides = array<i32>} : memref<2x128xf32, #tpu.memory_space<vmem>>, vector<2x128xf32>,
    return
  }
  func.func @transform_0(%arg0: i32) -> (i32, i32) {
    %c0_i32 = arith.constant 0 : i32
    %c0_i32_0 = arith.constant 0 : i32
    return %arg0, %c0_i32 : i32, i32
  }
  func.func @transform_1(%arg0: i32) -> (i32, i32) {
    %c0_i32 = arith.constant 0 : i32
    %c0_i32_0 = arith.constant 0 : i32
    %c0_i32_1 = arith.constant 0 : i32
    return %c0_i32, %c0_i32_0 : i32, i32
  }
  func.func @transform_2(%arg0: i32) -> (i32, i32) {
    %c0_i32 = arith.constant 0 : i32
    %c0_i32_0 = arith.constant 0 : i32
    %c0_i32_1 = arith.constant 0 : i32
    return %c0_i32, %c0_i32_0 : i32, i32
  }
  func.func @transform_3(%arg0: i32) -> (i32, i32) {
    %c0_i32 = arith.constant 0 : i32
    %c0_i32_0 = arith.constant 0 : i32
    %c0_i32_1 = arith.constant 0 : i32
    return %c0_i32, %c0_i32_0 : i32, i32
  }
  func.func @transform_4(%arg0: i32) -> (i32, i32) {
    %c0_i32 = arith.constant 0 : i32
    %c0_i32_0 = arith.constant 0 : i32
    %c0_i32_1 = arith.constant 0 : i32
    return %c0_i32, %c0_i32_0 : i32, i32
  }
  func.func @transform_5(%arg0: i32) -> (i32, i32) {
    %c0_i32 = arith.constant 0 : i32
    %c0_i32_0 = arith.constant 0 : i32
    %c0_i32_1 = arith.constant 0 : i32
    return %c0_i32, %c0_i32_0 : i32, i32
  }
  func.func @transform_6(%arg0: i32) -> (i32, i32) {
    %c0_i32 = arith.constant 0 : i32
    %c0_i32_0 = arith.constant 0 : i32
    %c0_i32_1 = arith.constant 0 : i32
    return %c0_i32, %c0_i32_0 : i32, i32
  }
  func.func @transform_7(%arg0: i32) -> (i32, i32) {
    %c0_i32 = arith.constant 0 : i32
    %c0_i32_0 = arith.constant 0 : i32
    return %arg0, %c0_i32 : i32, i32
  }
}

module attributes {stable_mosaic.version = 11 : i64} {
  func.func @_fused_head_kernel(%arg0: i32, %arg1: memref<2x256xf32, #tpu.memory_space<vmem>>, %arg2: memref<256x512xbf16, #tpu.memory_space<vmem>>, %arg3: memref<1x512xf32, #tpu.memory_space<vmem>>, %arg4: memref<512x32xbf16, #tpu.memory_space<vmem>>, %arg5: memref<1x32xf32, #tpu.memory_space<vmem>>, %arg6: memref<32x128xbf16, #tpu.memory_space<vmem>>, %arg7: memref<1x128xf32, #tpu.memory_space<vmem>>, %arg8: memref<2x128xf32, #tpu.memory_space<vmem>>) attributes {dimension_semantics = [#tpu.dimension_semantics<parallel>], iteration_bounds = array<i64: 1>, scalar_prefetch = 0 : i64, scratch_operands = 0 : i64, tpu.core_type = #tpu.core_type<tc>, window_params = [{transform_indices = @transform_0, window_bounds = array<i64: 2, 256>}, {pipeline_mode = #tpu.pipeline_mode<synchronous>, transform_indices = @transform_1, window_bounds = array<i64: 256, 512>}, {pipeline_mode = #tpu.pipeline_mode<synchronous>, transform_indices = @transform_2, window_bounds = array<i64: 1, 512>}, {pipeline_mode = #tpu.pipeline_mode<synchronous>, transform_indices = @transform_3, window_bounds = array<i64: 512, 32>}, {pipeline_mode = #tpu.pipeline_mode<synchronous>, transform_indices = @transform_4, window_bounds = array<i64: 1, 32>}, {pipeline_mode = #tpu.pipeline_mode<synchronous>, transform_indices = @transform_5, window_bounds = array<i64: 32, 128>}, {pipeline_mode = #tpu.pipeline_mode<synchronous>, transform_indices = @transform_6, window_bounds = array<i64: 1, 128>}, {transform_indices = @transform_7, window_bounds = array<i64: 2, 128>}]} {
    %c0 = arith.constant 0 : index
    %c0_0 = arith.constant 0 : index
    %0 = vector.load %arg1[%c0, %c0_0] : memref<2x256xf32, #tpu.memory_space<vmem>>, vector<2x256xf32>
    %1 = arith.truncf %0 : vector<2x256xf32> to vector<2x256xbf16>
    %c0_1 = arith.constant 0 : index
    %c0_2 = arith.constant 0 : index
    %2 = vector.load %arg2[%c0_1, %c0_2] : memref<256x512xbf16, #tpu.memory_space<vmem>>, vector<256x512xbf16>
    %cst = arith.constant dense<0.000000e+00> : vector<2x512xf32>
    %3 = tpu.matmul %1, %2, %cst {dimension_numbers = #tpu.dot_dimension_numbers<[1], [0], [0], [1], [0, 0, 1, 1], [], []>} : vector<2x256xbf16>, vector<256x512xbf16>, vector<2x512xf32> -> vector<2x512xf32>
    %c0_3 = arith.constant 0 : index
    %c0_4 = arith.constant 0 : index
    %4 = vector.load %arg3[%c0_3, %c0_4] : memref<1x512xf32, #tpu.memory_space<vmem>>, vector<1x512xf32>
    %5 = vector.broadcast %4 : vector<1x512xf32> to vector<2x512xf32>
    %6 = arith.addf %3, %5 : vector<2x512xf32>
    %cst_5 = arith.constant 0.000000e+00 : f32
    %7 = vector.broadcast %cst_5 : f32 to vector<2x512xf32>
    %8 = arith.maximumf %6, %7 : vector<2x512xf32>
    %9 = arith.truncf %8 : vector<2x512xf32> to vector<2x512xbf16>
    %c0_6 = arith.constant 0 : index
    %c0_7 = arith.constant 0 : index
    %10 = vector.load %arg4[%c0_6, %c0_7] : memref<512x32xbf16, #tpu.memory_space<vmem>>, vector<512x32xbf16>
    %cst_8 = arith.constant dense<0.000000e+00> : vector<2x32xf32>
    %11 = tpu.matmul %9, %10, %cst_8 {dimension_numbers = #tpu.dot_dimension_numbers<[1], [0], [0], [1], [0, 0, 1, 1], [], []>} : vector<2x512xbf16>, vector<512x32xbf16>, vector<2x32xf32> -> vector<2x32xf32>
    %c0_9 = arith.constant 0 : index
    %c0_10 = arith.constant 0 : index
    %12 = vector.load %arg5[%c0_9, %c0_10] : memref<1x32xf32, #tpu.memory_space<vmem>>, vector<1x32xf32>
    %13 = vector.broadcast %12 : vector<1x32xf32> to vector<2x32xf32>
    %14 = arith.addf %11, %13 : vector<2x32xf32>
    %cst_11 = arith.constant 0.000000e+00 : f32
    %15 = vector.broadcast %cst_11 : f32 to vector<2x32xf32>
    %16 = arith.maximumf %14, %15 : vector<2x32xf32>
    %17 = arith.truncf %16 : vector<2x32xf32> to vector<2x32xbf16>
    %c0_12 = arith.constant 0 : index
    %c0_13 = arith.constant 0 : index
    %18 = vector.load %arg6[%c0_12, %c0_13] : memref<32x128xbf16, #tpu.memory_space<vmem>>, vector<32x128xbf16>
    %cst_14 = arith.constant dense<0.000000e+00> : vector<2x128xf32>
    %19 = tpu.matmul %17, %18, %cst_14 {dimension_numbers = #tpu.dot_dimension_numbers<[1], [0], [0], [1], [0, 0, 1, 1], [], []>} : vector<2x32xbf16>, vector<32x128xbf16>, vector<2x128xf32> -> vector<2x128xf32>
    %c0_15 = arith.constant 0 : index
    %c0_16 = arith.constant 0 : index
    %20 = vector.load %arg7[%c0_15, %c0_16] : memref<1x128xf32, #tpu.memory_space<vmem>>, vector<1x128xf32>
    %21 = vector.broadcast %20 : vector<1x128xf32> to vector<2x128xf32>
    %22 = arith.addf %19, %21 : vector<2x128xf32>
    %cst_17 = arith.constant 0.000000e+00 : f32
    %23 = vector.broadcast %cst_17 : f32 to vector<2x128xf32>
    %24 = arith.maximumf %22, %23 : vector<2x128xf32>
    %c0_18 = arith.constant 0 : index
    %c0_19 = arith.constant 0 : index
    %25 = vector.load %arg8[%c0_18, %c0_19] : memref<2x128xf32, #tpu.memory_space<vmem>>, vector<2x128xf32>
    tpu.vector_store %arg8[%c0_18, %c0_19], %24 {strides = array<i32>} : memref<2x128xf32, #tpu.memory_space<vmem>>, vector<2x128xf32>,
    return
  }
  func.func @transform_0(%arg0: i32) -> (i32, i32) {
    %c0_i32 = arith.constant 0 : i32
    %c0_i32_0 = arith.constant 0 : i32
    return %arg0, %c0_i32 : i32, i32
  }
  func.func @transform_1(%arg0: i32) -> (i32, i32) {
    %c0_i32 = arith.constant 0 : i32
    %c0_i32_0 = arith.constant 0 : i32
    %c0_i32_1 = arith.constant 0 : i32
    return %c0_i32, %c0_i32_0 : i32, i32
  }
  func.func @transform_2(%arg0: i32) -> (i32, i32) {
    %c0_i32 = arith.constant 0 : i32
    %c0_i32_0 = arith.constant 0 : i32
    %c0_i32_1 = arith.constant 0 : i32
    return %c0_i32, %c0_i32_0 : i32, i32
  }
  func.func @transform_3(%arg0: i32) -> (i32, i32) {
    %c0_i32 = arith.constant 0 : i32
    %c0_i32_0 = arith.constant 0 : i32
    %c0_i32_1 = arith.constant 0 : i32
    return %c0_i32, %c0_i32_0 : i32, i32
  }
  func.func @transform_4(%arg0: i32) -> (i32, i32) {
    %c0_i32 = arith.constant 0 : i32
    %c0_i32_0 = arith.constant 0 : i32
    %c0_i32_1 = arith.constant 0 : i32
    return %c0_i32, %c0_i32_0 : i32, i32
  }
  func.func @transform_5(%arg0: i32) -> (i32, i32) {
    %c0_i32 = arith.constant 0 : i32
    %c0_i32_0 = arith.constant 0 : i32
    %c0_i32_1 = arith.constant 0 : i32
    return %c0_i32, %c0_i32_0 : i32, i32
  }
  func.func @transform_6(%arg0: i32) -> (i32, i32) {
    %c0_i32 = arith.constant 0 : i32
    %c0_i32_0 = arith.constant 0 : i32
    %c0_i32_1 = arith.constant 0 : i32
    return %c0_i32, %c0_i32_0 : i32, i32
  }
  func.func @transform_7(%arg0: i32) -> (i32, i32) {
    %c0_i32 = arith.constant 0 : i32
    %c0_i32_0 = arith.constant 0 : i32
    return %arg0, %c0_i32 : i32, i32
  }
}

</mosaic_0001>

<llo_original>
// kernel: tpu_custom_call.1
$region0: #{tpu_custom_call.1}
  #allocation0 [shape = 'u32[]', space=smem, size = 0x4, offset = 0x4, fixed_abs, tag = 'smem constant byte address 0x4 - core index']
  #allocation1 [shape = 'u32[144,128]{1,0:T(1,128)}', space=vmem, size = 0x12000, scoped, tag = 'internal scratch']
  %s0 = inlined_call_operand.vmem [shape: f32[2,256], index: 0, kind: input, shape index: {}]
  %s1 = inlined_call_operand.hbm [shape: bf16[256,512], index: 1, kind: input, shape index: {}]
  %s2 = inlined_call_operand.vmem [shape: f32[1,512], index: 2, kind: input, shape index: {}]
  %s3 = inlined_call_operand.vmem [shape: bf16[512,32], index: 3, kind: input, shape index: {}]
  %s4 = inlined_call_operand.vmem [shape: f32[1,32], index: 4, kind: input, shape index: {}]
  %s5 = inlined_call_operand.vmem [shape: bf16[32,128], index: 5, kind: input, shape index: {}]
  %s6 = inlined_call_operand.vmem [shape: f32[1,128], index: 6, kind: input, shape index: {}]
  %s7 = inlined_call_operand.hbm [shape: f32[2,128], index: 7, kind: output, shape index: {}]
  %s8 = sld [smem:[#allocation0]]
  $region42: #{tpu_custom_call.1} parent=0
    _
  %s10 = ssub.s32 1, %s8
  %s11 = scalar_select 0, %s10, %s8
  $region1: #{tpu_custom_call.1} parent=0
    #allocation2 [shape = 'u8[262144]{0}', space=vmem, size = 0x40000, scoped, tag = 'input window, operand 1, single buffered']
    #allocation3 [shape = 's32[1]{0}', space=sflag, size = 0x4, scoped, tag = 'scoped memory for tpu_custom_call.1']
    #allocation4 [shape = 's32[1]{0}', space=sflag, size = 0x4, scoped, tag = 'scoped memory for tpu_custom_call.1']
    #allocation5 [shape = 'u8[1024]{0}', space=vmem, size = 0x400, scoped, tag = 'output window, operand 0, single buffered']
    %12 = vsyncpa [#allocation3], 0
    %13 = vsyncpa [#allocation4], 0
    // Predicated region
    $region2: #{tpu_custom_call.1} parent=1 // pred_check
      _
    $region3: #{tpu_custom_call.1} parent=1 // pred_check_branch
      %15 = sbr.rel (0) target = $region5
    $region4: #{tpu_custom_call.1} parent=1 // pred_region
      _
    $region5: #{tpu_custom_call.1} parent=1 // pred_fallthru
      _
    // Predicated region
    $region6: #{tpu_custom_call.1} parent=1 // pred_check
      _
    $region7: #{tpu_custom_call.1} parent=1 // pred_check_branch
      %17 = sbr.rel (0) target = $region9
    $region8: #{tpu_custom_call.1} parent=1 // pred_region
      %s19 = ssub.s32 8192, 8192
      %20 = vsyncadd [#allocation3], %s19
      %s21 = sshll.u32 [#allocation2], 4
      %s22 = int_to_ptr.vmem [resolvable:$true] %s21
      %27 = dma.hbm_to_vmem [thread:$0]  %s1, 8192, %s22, [#allocation3], 256, 256, 16
    $region9: #{tpu_custom_call.1} parent=1 // pred_fallthru
      _
    // Predicated region
    $region10: #{tpu_custom_call.1} parent=1 // pred_check
      _
    $region11: #{tpu_custom_call.1} parent=1 // pred_check_branch
      %29 = sbr.rel (0) target = $region13
    $region12: #{tpu_custom_call.1} parent=1 // pred_region
      _
    $region13: #{tpu_custom_call.1} parent=1 // pred_fallthru
      _
    // Predicated region
    $region14: #{tpu_custom_call.1} parent=1 // pred_check
      _
    $region15: #{tpu_custom_call.1} parent=1 // pred_check_branch
      %31 = sbr.rel (0) target = $region17
    $region16: #{tpu_custom_call.1} parent=1 // pred_region
      _
    $region17: #{tpu_custom_call.1} parent=1 // pred_fallthru
      _
    // Predicated region
    $region18: #{tpu_custom_call.1} parent=1 // pred_check
      _
    $region19: #{tpu_custom_call.1} parent=1 // pred_check_branch
      %33 = sbr.rel (0) target = $region21
    $region20: #{tpu_custom_call.1} parent=1 // pred_region
      _
    $region21: #{tpu_custom_call.1} parent=1 // pred_fallthru
      _
    // Predicated region
    $region22: #{tpu_custom_call.1} parent=1 // pred_check
      _
    $region23: #{tpu_custom_call.1} parent=1 // pred_check_branch
      %35 = sbr.rel (0) target = $region25
    $region24: #{tpu_custom_call.1} parent=1 // pred_region
      _
    $region25: #{tpu_custom_call.1} parent=1 // pred_fallthru
      _
    // Predicated region
    $region26: #{tpu_custom_call.1} parent=1 // pred_check
      _
    $region27: #{tpu_custom_call.1} parent=1 // pred_check_branch
      %37 = sbr.rel (0) target = $region29
    $region28: #{tpu_custom_call.1} parent=1 // pred_region
      _
    $region29: #{tpu_custom_call.1} parent=1 // pred_fallthru
      _
    // Predicated region
    $region30: #{tpu_custom_call.1} parent=1 // pred_check
      _
    $region31: #{tpu_custom_call.1} parent=1 // pred_check_branch
      %39 = sbr.rel (0) target = $region33
    $region32: #{tpu_custom_call.1} parent=1 // pred_region
      %40 = dma.done [#allocation3], 8192
    $region33: #{tpu_custom_call.1} parent=1 // pred_fallthru
      _
    %v42 = vld [vmem:[%s0] sm:$0xf]
    %v45 = vunpack.c.l.s4 1983009808
    %v46 = vunpack.c.0.s8 %v45
    %v47 = vlaneseq
    %v48 = vshrl.u32 %v47, 7
    %v49 = vsub.s32 %v46, %v48
    %v50 = vrot.slane %v42, %v49
    %v51 = vcombine.high %v50, %v50
    %v54 = vpack.c.bf16 %v50, %v50
    %v55 = vpack.c.bf16 %v51, %v51
    %v56 = vld [vmem:[#allocation2] sm:$0xff]
    %v57 = vld [vmem:[#allocation2 + $0x8] sm:$0xff]
    %v58 = vld [vmem:[#allocation2 + $0x10] sm:$0xff]
    %v59 = vld [vmem:[#allocation2 + $0x18] sm:$0xff]
    %v60 = vld [vmem:[#allocation2 + $0x20] sm:$0xff]
    %v61 = vld [vmem:[#allocation2 + $0x28] sm:$0xff]
    %v62 = vld [vmem:[#allocation2 + $0x30] sm:$0xff]
    %v63 = vld [vmem:[#allocation2 + $0x38] sm:$0xff]
    %v64 = vld [vmem:[#allocation2 + $0x40] sm:$0xff]
    %v65 = vld [vmem:[#allocation2 + $0x48] sm:$0xff]
    %v66 = vld [vmem:[#allocation2 + $0x50] sm:$0xff]
    %v67 = vld [vmem:[#allocation2 + $0x58] sm:$0xff]
    %v68 = vld [vmem:[#allocation2 + $0x60] sm:$0xff]
    %v69 = vld [vmem:[#allocation2 + $0x68] sm:$0xff]
    %v70 = vld [vmem:[#allocation2 + $0x70] sm:$0xff]
    %v71 = vld [vmem:[#allocation2 + $0x78] sm:$0xff]
    %v72 = vld [vmem:[#allocation2 + $0x80] sm:$0xff]
    %v73 = vld [vmem:[#allocation2 + $0x88] sm:$0xff]
    %v74 = vld [vmem:[#allocation2 + $0x90] sm:$0xff]
    %v75 = vld [vmem:[#allocation2 + $0x98] sm:$0xff]
    %v76 = vld [vmem:[#allocation2 + $0xa0] sm:$0xff]
    %v77 = vld [vmem:[#allocation2 + $0xa8] sm:$0xff]
    %v78 = vld [vmem:[#allocation2 + $0xb0] sm:$0xff]
    %v79 = vld [vmem:[#allocation2 + $0xb8] sm:$0xff]
    %v80 = vld [vmem:[#allocation2 + $0xc0] sm:$0xff]
    %v81 = vld [vmem:[#allocation2 + $0xc8] sm:$0xff]
    %v82 = vld [vmem:[#allocation2 + $0xd0] sm:$0xff]
    %v83 = vld [vmem:[#allocation2 + $0xd8] sm:$0xff]
    %v84 = vld [vmem:[#allocation2 + $0xe0] sm:$0xff]
    %v85 = vld [vmem:[#allocation2 + $0xe8] sm:$0xff]
    %v86 = vld [vmem:[#allocation2 + $0xf0] sm:$0xff]
    %v87 = vld [vmem:[#allocation2 + $0xf8] sm:$0xff]
    %v88 = vld [vmem:[#allocation2 + $0x100] sm:$0xff]
    %v89 = vld [vmem:[#allocation2 + $0x108] sm:$0xff]
    %v90 = vld [vmem:[#allocation2 + $0x110] sm:$0xff]
    %v91 = vld [vmem:[#allocation2 + $0x118] sm:$0xff]
    %v92 = vld [vmem:[#allocation2 + $0x120] sm:$0xff]
    %v93 = vld [vmem:[#allocation2 + $0x128] sm:$0xff]
    %v94 = vld [vmem:[#allocation2 + $0x130] sm:$0xff]
    %v95 = vld [vmem:[#allocation2 + $0x138] sm:$0xff]
    %v96 = vld [vmem:[#allocation2 + $0x140] sm:$0xff]
    %v97 = vld [vmem:[#allocation2 + $0x148] sm:$0xff]
    %v98 = vld [vmem:[#allocation2 + $0x150] sm:$0xff]
    %v99 = vld [vmem:[#allocation2 + $0x158] sm:$0xff]
    %v100 = vld [vmem:[#allocation2 + $0x160] sm:$0xff]
    %v101 = vld [vmem:[#allocation2 + $0x168] sm:$0xff]
    %v102 = vld [vmem:[#allocation2 + $0x170] sm:$0xff]
    %v103 = vld [vmem:[#allocation2 + $0x178] sm:$0xff]
    %v104 = vld [vmem:[#allocation2 + $0x180] sm:$0xff]
    %v105 = vld [vmem:[#allocation2 + $0x188] sm:$0xff]
    %v106 = vld [vmem:[#allocation2 + $0x190] sm:$0xff]
    %v107 = vld [vmem:[#allocation2 + $0x198] sm:$0xff]
    %v108 = vld [vmem:[#allocation2 + $0x1a0] sm:$0xff]
    %v109 = vld [vmem:[#allocation2 + $0x1a8] sm:$0xff]
    %v110 = vld [vmem:[#allocation2 + $0x1b0] sm:$0xff]
    %v111 = vld [vmem:[#allocation2 + $0x1b8] sm:$0xff]
    %v112 = vld [vmem:[#allocation2 + $0x1c0] sm:$0xff]
    %v113 = vld [vmem:[#allocation2 + $0x1c8] sm:$0xff]
    %v114 = vld [vmem:[#allocation2 + $0x1d0] sm:$0xff]
    %v115 = vld [vmem:[#allocation2 + $0x1d8] sm:$0xff]
    %v116 = vld [vmem:[#allocation2 + $0x1e0] sm:$0xff]
    %v117 = vld [vmem:[#allocation2 + $0x1e8] sm:$0xff]
    %v118 = vld [vmem:[#allocation2 + $0x1f0] sm:$0xff]
    %v119 = vld [vmem:[#allocation2 + $0x1f8] sm:$0xff]
    %v120 = vld [vmem:[%s2] sm:$0xf]
    %v122 = vlaneseq
    %v123 = vshrl.u32 %v122, 7
    %v124 = vsub.s32 0, %v123
    %v125 = vrot.slane %v120, %v124
    %v126 = vlaneseq
    %v127 = vshrl.u32 %v126, 7
    %v128 = vsub.s32 1, %v127
    %v129 = vrot.slane %v120, %v128
    %v130 = vlaneseq
    %v131 = vshrl.u32 %v130, 7
    %v132 = vsub.s32 2, %v131
    %v133 = vrot.slane %v120, %v132
    %v134 = vlaneseq
    %v135 = vshrl.u32 %v134, 7
    %v136 = vsub.s32 3, %v135
    %v137 = vrot.slane %v120, %v136
    %v206 = vunpack.c.l.b16 %v56
    %v207 = vunpack.c.h.b16 %v56
    %v208 = vunpack.c.l.b16 %v57
    %v209 = vunpack.c.h.b16 %v57
    %v210 = vunpack.c.l.b16 %v58
    %v211 = vunpack.c.h.b16 %v58
    %v212 = vunpack.c.l.b16 %v59
    %v213 = vunpack.c.h.b16 %v59
    %v214 = vunpack.c.l.b16 %v60
    %v215 = vunpack.c.h.b16 %v60
    %v216 = vunpack.c.l.b16 %v61
    %v217 = vunpack.c.h.b16 %v61
    %v218 = vunpack.c.l.b16 %v62
    %v219 = vunpack.c.h.b16 %v62
    %v220 = vunpack.c.l.b16 %v63
    %v221 = vunpack.c.h.b16 %v63
    %v222 = vunpack.c.l.b16 %v64
    %v223 = vunpack.c.h.b16 %v64
    %v224 = vunpack.c.l.b16 %v65
    %v225 = vunpack.c.h.b16 %v65
    %v226 = vunpack.c.l.b16 %v66
    %v227 = vunpack.c.h.b16 %v66
    %v228 = vunpack.c.l.b16 %v67
    %v229 = vunpack.c.h.b16 %v67
    %v230 = vunpack.c.l.b16 %v68
    %v231 = vunpack.c.h.b16 %v68
    %v232 = vunpack.c.l.b16 %v69
    %v233 = vunpack.c.h.b16 %v69
    %v234 = vunpack.c.l.b16 %v70
    %v235 = vunpack.c.h.b16 %v70
    %v236 = vunpack.c.l.b16 %v71
    %v237 = vunpack.c.h.b16 %v71
    %v238 = vunpack.c.l.b16 %v72
    %v239 = vunpack.c.h.b16 %v72
    %v240 = vunpack.c.l.b16 %v73
    %v241 = vunpack.c.h.b16 %v73
    %v242 = vunpack.c.l.b16 %v74
    %v243 = vunpack.c.h.b16 %v74
    %v244 = vunpack.c.l.b16 %v75
    %v245 = vunpack.c.h.b16 %v75
    %v246 = vunpack.c.l.b16 %v76
    %v247 = vunpack.c.h.b16 %v76
    %v248 = vunpack.c.l.b16 %v77
    %v249 = vunpack.c.h.b16 %v77
    %v250 = vunpack.c.l.b16 %v78
    %v251 = vunpack.c.h.b16 %v78
    %v252 = vunpack.c.l.b16 %v79
    %v253 = vunpack.c.h.b16 %v79
    %v254 = vunpack.c.l.b16 %v80
    %v255 = vunpack.c.h.b16 %v80
    %v256 = vunpack.c.l.b16 %v81
    %v257 = vunpack.c.h.b16 %v81
    %v258 = vunpack.c.l.b16 %v82
    %v259 = vunpack.c.h.b16 %v82
    %v260 = vunpack.c.l.b16 %v83
    %v261 = vunpack.c.h.b16 %v83
    %v262 = vunpack.c.l.b16 %v84
    %v263 = vunpack.c.h.b16 %v84
    %v264 = vunpack.c.l.b16 %v85
    %v265 = vunpack.c.h.b16 %v85
    %v266 = vunpack.c.l.b16 %v86
    %v267 = vunpack.c.h.b16 %v86
    %v268 = vunpack.c.l.b16 %v87
    %v269 = vunpack.c.h.b16 %v87
    %v270 = vunpack.c.l.b16 %v88
    %v271 = vunpack.c.h.b16 %v88
    %v272 = vunpack.c.l.b16 %v89
    %v273 = vunpack.c.h.b16 %v89
    %v274 = vunpack.c.l.b16 %v90
    %v275 = vunpack.c.h.b16 %v90
    %v276 = vunpack.c.l.b16 %v91
    %v277 = vunpack.c.h.b16 %v91
    %v278 = vunpack.c.l.b16 %v92
    %v279 = vunpack.c.h.b16 %v92
    %v280 = vunpack.c.l.b16 %v93
    %v281 = vunpack.c.h.b16 %v93
    %v282 = vunpack.c.l.b16 %v94
    %v283 = vunpack.c.h.b16 %v94
    %v284 = vunpack.c.l.b16 %v95
    %v285 = vunpack.c.h.b16 %v95
    %v286 = vunpack.c.l.b16 %v96
    %v287 = vunpack.c.h.b16 %v96
    %v288 = vunpack.c.l.b16 %v97
    %v289 = vunpack.c.h.b16 %v97
    %v290 = vunpack.c.l.b16 %v98
    %v291 = vunpack.c.h.b16 %v98
    %v292 = vunpack.c.l.b16 %v99
    %v293 = vunpack.c.h.b16 %v99
    %v294 = vunpack.c.l.b16 %v100
    %v295 = vunpack.c.h.b16 %v100
    %v296 = vunpack.c.l.b16 %v101
    %v297 = vunpack.c.h.b16 %v101
    %v298 = vunpack.c.l.b16 %v102
    %v299 = vunpack.c.h.b16 %v102
    %v300 = vunpack.c.l.b16 %v103
    %v301 = vunpack.c.h.b16 %v103
    %v302 = vunpack.c.l.b16 %v104
    %v303 = vunpack.c.h.b16 %v104
    %v304 = vunpack.c.l.b16 %v105
    %v305 = vunpack.c.h.b16 %v105
    %v306 = vunpack.c.l.b16 %v106
    %v307 = vunpack.c.h.b16 %v106
    %v308 = vunpack.c.l.b16 %v107
    %v309 = vunpack.c.h.b16 %v107
    %v310 = vunpack.c.l.b16 %v108
    %v311 = vunpack.c.h.b16 %v108
    %v312 = vunpack.c.l.b16 %v109
    %v313 = vunpack.c.h.b16 %v109
    %v314 = vunpack.c.l.b16 %v110
    %v315 = vunpack.c.h.b16 %v110
    %v316 = vunpack.c.l.b16 %v111
    %v317 = vunpack.c.h.b16 %v111
    %v318 = vunpack.c.l.b16 %v112
    %v319 = vunpack.c.h.b16 %v112
    %v320 = vunpack.c.l.b16 %v113
    %v321 = vunpack.c.h.b16 %v113
    %v322 = vunpack.c.l.b16 %v114
    %v323 = vunpack.c.h.b16 %v114
    %v324 = vunpack.c.l.b16 %v115
    %v325 = vunpack.c.h.b16 %v115
    %v326 = vunpack.c.l.b16 %v116
    %v327 = vunpack.c.h.b16 %v116
    %v328 = vunpack.c.l.b16 %v117
    %v329 = vunpack.c.h.b16 %v117
    %v330 = vunpack.c.l.b16 %v118
    %v331 = vunpack.c.h.b16 %v118
    %v332 = vunpack.c.l.b16 %v119
    %v333 = vunpack.c.h.b16 %v119
    %v334 = vpack.c.b16 %v210, %v206
    %v335 = vpack.c.b16 %v211, %v207
    %v336 = vpack.c.b16 %v212, %v208
    %v337 = vpack.c.b16 %v213, %v209
    %v338 = vpack.c.b16 %v218, %v214
    %v339 = vpack.c.b16 %v219, %v215
    %v340 = vpack.c.b16 %v220, %v216
    %v341 = vpack.c.b16 %v221, %v217
    %v342 = vpack.c.b16 %v226, %v222
    %v343 = vpack.c.b16 %v227, %v223
    %v344 = vpack.c.b16 %v228, %v224
    %v345 = vpack.c.b16 %v229, %v225
    %v346 = vpack.c.b16 %v234, %v230
    %v347 = vpack.c.b16 %v235, %v231
    %v348 = vpack.c.b16 %v236, %v232
    %v349 = vpack.c.b16 %v237, %v233
    %v350 = vpack.c.b16 %v242, %v238
    %v351 = vpack.c.b16 %v243, %v239
    %v352 = vpack.c.b16 %v244, %v240
    %v353 = vpack.c.b16 %v245, %v241
    %v354 = vpack.c.b16 %v250, %v246
    %v355 = vpack.c.b16 %v251, %v247
    %v356 = vpack.c.b16 %v252, %v248
    %v357 = vpack.c.b16 %v253, %v249
    %v358 = vpack.c.b16 %v258, %v254
    %v359 = vpack.c.b16 %v259, %v255
    %v360 = vpack.c.b16 %v260, %v256
    %v361 = vpack.c.b16 %v261, %v257
    %v362 = vpack.c.b16 %v266, %v262
    %v363 = vpack.c.b16 %v267, %v263
    %v364 = vpack.c.b16 %v268, %v264
    %v365 = vpack.c.b16 %v269, %v265
    %v366 = vpack.c.b16 %v274, %v270
    %v367 = vpack.c.b16 %v275, %v271
    %v368 = vpack.c.b16 %v276, %v272
    %v369 = vpack.c.b16 %v277, %v273
    %v370 = vpack.c.b16 %v282, %v278
    %v371 = vpack.c.b16 %v283, %v279
    %v372 = vpack.c.b16 %v284, %v280
    %v373 = vpack.c.b16 %v285, %v281
    %v374 = vpack.c.b16 %v290, %v286
    %v375 = vpack.c.b16 %v291, %v287
    %v376 = vpack.c.b16 %v292, %v288
    %v377 = vpack.c.b16 %v293, %v289
    %v378 = vpack.c.b16 %v298, %v294
    %v379 = vpack.c.b16 %v299, %v295
    %v380 = vpack.c.b16 %v300, %v296
    %v381 = vpack.c.b16 %v301, %v297
    %v382 = vpack.c.b16 %v306, %v302
    %v383 = vpack.c.b16 %v307, %v303
    %v384 = vpack.c.b16 %v308, %v304
    %v385 = vpack.c.b16 %v309, %v305
    %v386 = vpack.c.b16 %v314, %v310
    %v387 = vpack.c.b16 %v315, %v311
    %v388 = vpack.c.b16 %v316, %v312
    %v389 = vpack.c.b16 %v317, %v313
    %v390 = vpack.c.b16 %v322, %v318
    %v391 = vpack.c.b16 %v323, %v319
    %v392 = vpack.c.b16 %v324, %v320
    %v393 = vpack.c.b16 %v325, %v321
    %v394 = vpack.c.b16 %v330, %v326
    %v395 = vpack.c.b16 %v331, %v327
    %v396 = vpack.c.b16 %v332, %v328
    %v397 = vpack.c.b16 %v333, %v329
    %462 = vmatprep.subr.bf16.mxu0 %v363
    %463 = vmatpush1.bf16.msra.mxu0 %v362
    %464 = vmatprep.subr.bf16.mxu0 %v359
    %465 = vmatpush1.bf16.msra.mxu0 %v358
    %466 = vmatprep.subr.bf16.mxu0 %v355
    %467 = vmatpush1.bf16.msra.mxu0 %v354
    %468 = vmatprep.subr.bf16.mxu0 %v351
    %469 = vmatpush1.bf16.msra.mxu0 %v350
    %470 = vmatprep.subr.bf16.mxu0 %v347
    %471 = vmatpush1.bf16.msra.mxu0 %v346
    %472 = vmatprep.subr.bf16.mxu0 %v343
    %473 = vmatpush1.bf16.msra.mxu0 %v342
    %474 = vmatprep.subr.bf16.mxu0 %v339
    %475 = vmatpush1.bf16.msra.mxu0 %v338
    %476 = vmatprep.subr.bf16.mxu0 %v335
    %477 = vmatpush1.bf16.msra.mxu0 %v334
    %478 = vmatprep.subr.bf16.mxu0 %v395
    %479 = vmatpush2.bf16.msra.mxu0 %v394
    %480 = vmatprep.subr.bf16.mxu0 %v391
    %481 = vmatpush2.bf16.msra.mxu0 %v390
    %482 = vmatprep.subr.bf16.mxu0 %v387
    %483 = vmatpush2.bf16.msra.mxu0 %v386
    %484 = vmatprep.subr.bf16.mxu0 %v383
    %485 = vmatpush2.bf16.msra.mxu0 %v382
    %486 = vmatprep.subr.bf16.mxu0 %v379
    %487 = vmatpush2.bf16.msra.mxu0 %v378
    %488 = vmatprep.subr.bf16.mxu0 %v375
    %489 = vmatpush2.bf16.msra.mxu0 %v374
    %490 = vmatprep.subr.bf16.mxu0 %v371
    %491 = vmatpush2.bf16.msra.mxu0 %v370
    %492 = vmatprep.subr.bf16.mxu0 %v367
    %493 = vmatpush2.bf16.msra.mxu0 %v366
    %494 = vmatprep.mubr.bf16.mxu0 %v55
    %495 = vmatmul.mubr.bf16.gmra.mxu0 %v54
    %v496 = vpop.f32.mrf.mxu0
    %v497 = vadd.f32 %v125, %v496
    %v498 = vpop.f32.mrf.mxu0
    %v499 = vadd.f32 %v129, %v498
    %v500 = vpop.f32.mrf.mxu0
    %v501 = vpop.f32.mrf.mxu0
    %502 = vdwg.mxu0
    %503 = vmatprep.subr.bf16.mxu0 %v365
    %504 = vmatpush1.bf16.msra.mxu0 %v364
    %505 = vmatprep.subr.bf16.mxu0 %v361
    %506 = vmatpush1.bf16.msra.mxu0 %v360
    %507 = vmatprep.subr.bf16.mxu0 %v357
    %508 = vmatpush1.bf16.msra.mxu0 %v356
    %509 = vmatprep.subr.bf16.mxu0 %v353
    %510 = vmatpush1.bf16.msra.mxu0 %v352
    %511 = vmatprep.subr.bf16.mxu0 %v349
    %512 = vmatpush1.bf16.msra.mxu0 %v348
    %513 = vmatprep.subr.bf16.mxu0 %v345
    %514 = vmatpush1.bf16.msra.mxu0 %v344
    %515 = vmatprep.subr.bf16.mxu0 %v341
    %516 = vmatpush1.bf16.msra.mxu0 %v340
    %517 = vmatprep.subr.bf16.mxu0 %v337
    %518 = vmatpush1.bf16.msra.mxu0 %v336
    %519 = vmatprep.subr.bf16.mxu0 %v397
    %520 = vmatpush2.bf16.msra.mxu0 %v396
    %521 = vmatprep.subr.bf16.mxu0 %v393
    %522 = vmatpush2.bf16.msra.mxu0 %v392
    %523 = vmatprep.subr.bf16.mxu0 %v389
    %524 = vmatpush2.bf16.msra.mxu0 %v388
    %525 = vmatprep.subr.bf16.mxu0 %v385
    %526 = vmatpush2.bf16.msra.mxu0 %v384
    %527 = vmatprep.subr.bf16.mxu0 %v381
    %528 = vmatpush2.bf16.msra.mxu0 %v380
    %529 = vmatprep.subr.bf16.mxu0 %v377
    %530 = vmatpush2.bf16.msra.mxu0 %v376
    %531 = vmatprep.subr.bf16.mxu0 %v373
    %532 = vmatpush2.bf16.msra.mxu0 %v372
    %533 = vmatprep.subr.bf16.mxu0 %v369
    %534 = vmatpush2.bf16.msra.mxu0 %v368
    %535 = vmatprep.mubr.bf16.mxu0 %v55
    %536 = vmatmul.mubr.bf16.gmra.mxu0 %v54
    %v537 = vpop.f32.mrf.mxu0
    %v538 = vadd.f32 %v133, %v537
    %v539 = vpop.f32.mrf.mxu0
    %v540 = vadd.f32 %v137, %v539
    %v541 = vpop.f32.mrf.mxu0
    %v542 = vpop.f32.mrf.mxu0
    %543 = vdwg.mxu0
    %v544 = vmax.f32 %v497, 0.0
    %v545 = vmax.f32 %v499, 0.0
    %v546 = vmax.f32 %v538, 0.0
    %v547 = vmax.f32 %v540, 0.0
    %v548 = vpack.c.bf16 %v544, %v544
    %v549 = vpack.c.bf16 %v545, %v545
    %v550 = vpack.c.bf16 %v546, %v546
    %v551 = vpack.c.bf16 %v547, %v547
    %v552 = vld [vmem:[%s3] sm:$0xf]
    %v553 = vld [vmem:[%s3 + $0x4] sm:$0xf]
    %v554 = vld [vmem:[%s3 + $0x8] sm:$0xf]
    %v555 = vld [vmem:[%s3 + $0xc] sm:$0xf]
    %v556 = vld [vmem:[%s3 + $0x10] sm:$0xf]
    %v557 = vld [vmem:[%s3 + $0x14] sm:$0xf]
    %v558 = vld [vmem:[%s3 + $0x18] sm:$0xf]
    %v559 = vld [vmem:[%s3 + $0x1c] sm:$0xf]
    %v560 = vld [vmem:[%s3 + $0x20] sm:$0xf]
    %v561 = vld [vmem:[%s3 + $0x24] sm:$0xf]
    %v562 = vld [vmem:[%s3 + $0x28] sm:$0xf]
    %v563 = vld [vmem:[%s3 + $0x2c] sm:$0xf]
    %v564 = vld [vmem:[%s3 + $0x30] sm:$0xf]
    %v565 = vld [vmem:[%s3 + $0x34] sm:$0xf]
    %v566 = vld [vmem:[%s3 + $0x38] sm:$0xf]
    %v567 = vld [vmem:[%s3 + $0x3c] sm:$0xf]
    %v568 = vld [vmem:[%s3 + $0x40] sm:$0xf]
    %v569 = vld [vmem:[%s3 + $0x44] sm:$0xf]
    %v570 = vld [vmem:[%s3 + $0x48] sm:$0xf]
    %v571 = vld [vmem:[%s3 + $0x4c] sm:$0xf]
    %v572 = vld [vmem:[%s3 + $0x50] sm:$0xf]
    %v573 = vld [vmem:[%s3 + $0x54] sm:$0xf]
    %v574 = vld [vmem:[%s3 + $0x58] sm:$0xf]
    %v575 = vld [vmem:[%s3 + $0x5c] sm:$0xf]
    %v576 = vld [vmem:[%s3 + $0x60] sm:$0xf]
    %v577 = vld [vmem:[%s3 + $0x64] sm:$0xf]
    %v578 = vld [vmem:[%s3 + $0x68] sm:$0xf]
    %v579 = vld [vmem:[%s3 + $0x6c] sm:$0xf]
    %v580 = vld [vmem:[%s3 + $0x70] sm:$0xf]
    %v581 = vld [vmem:[%s3 + $0x74] sm:$0xf]
    %v582 = vld [vmem:[%s3 + $0x78] sm:$0xf]
    %v583 = vld [vmem:[%s3 + $0x7c] sm:$0xf]
    %v584 = vld [vmem:[%s3 + $0x80] sm:$0xf]
    %v585 = vld [vmem:[%s3 + $0x84] sm:$0xf]
    %v586 = vld [vmem:[%s3 + $0x88] sm:$0xf]
    %v587 = vld [vmem:[%s3 + $0x8c] sm:$0xf]
    %v588 = vld [vmem:[%s3 + $0x90] sm:$0xf]
    %v589 = vld [vmem:[%s3 + $0x94] sm:$0xf]
    %v590 = vld [vmem:[%s3 + $0x98] sm:$0xf]
    %v591 = vld [vmem:[%s3 + $0x9c] sm:$0xf]
    %v592 = vld [vmem:[%s3 + $0xa0] sm:$0xf]
    %v593 = vld [vmem:[%s3 + $0xa4] sm:$0xf]
    %v594 = vld [vmem:[%s3 + $0xa8] sm:$0xf]
    %v595 = vld [vmem:[%s3 + $0xac] sm:$0xf]
    %v596 = vld [vmem:[%s3 + $0xb0] sm:$0xf]
    %v597 = vld [vmem:[%s3 + $0xb4] sm:$0xf]
    %v598 = vld [vmem:[%s3 + $0xb8] sm:$0xf]
    %v599 = vld [vmem:[%s3 + $0xbc] sm:$0xf]
    %v600 = vld [vmem:[%s3 + $0xc0] sm:$0xf]
    %v601 = vld [vmem:[%s3 + $0xc4] sm:$0xf]
    %v602 = vld [vmem:[%s3 + $0xc8] sm:$0xf]
    %v603 = vld [vmem:[%s3 + $0xcc] sm:$0xf]
    %v604 = vld [vmem:[%s3 + $0xd0] sm:$0xf]
    %v605 = vld [vmem:[%s3 + $0xd4] sm:$0xf]
    %v606 = vld [vmem:[%s3 + $0xd8] sm:$0xf]
    %v607 = vld [vmem:[%s3 + $0xdc] sm:$0xf]
    %v608 = vld [vmem:[%s3 + $0xe0] sm:$0xf]
    %v609 = vld [vmem:[%s3 + $0xe4] sm:$0xf]
    %v610 = vld [vmem:[%s3 + $0xe8] sm:$0xf]
    %v611 = vld [vmem:[%s3 + $0xec] sm:$0xf]
    %v612 = vld [vmem:[%s3 + $0xf0] sm:$0xf]
    %v613 = vld [vmem:[%s3 + $0xf4] sm:$0xf]
    %v614 = vld [vmem:[%s3 + $0xf8] sm:$0xf]
    %v615 = vld [vmem:[%s3 + $0xfc] sm:$0xf]
    %v616 = vld [vmem:[%s4] sm:$0x1]
    %v618 = vlaneseq
    %v619 = vshrl.u32 %v618, 7
    %v620 = vsub.s32 0, %v619
    %v621 = vrot.slane %v616, %v620
    %v687 = vunpack.c.l.b16 %v552
    %v688 = vunpack.c.l.b16 %v553
    %v689 = vunpack.c.l.b16 %v554
    %v690 = vunpack.c.l.b16 %v555
    %v691 = vunpack.c.l.b16 %v556
    %v692 = vunpack.c.l.b16 %v557
    %v693 = vunpack.c.l.b16 %v558
    %v694 = vunpack.c.l.b16 %v559
    %v695 = vunpack.c.l.b16 %v560
    %v696 = vunpack.c.l.b16 %v561
    %v697 = vunpack.c.l.b16 %v562
    %v698 = vunpack.c.l.b16 %v563
    %v699 = vunpack.c.l.b16 %v564
    %v700 = vunpack.c.l.b16 %v565
    %v701 = vunpack.c.l.b16 %v566
    %v702 = vunpack.c.l.b16 %v567
    %v703 = vunpack.c.l.b16 %v568
    %v704 = vunpack.c.l.b16 %v569
    %v705 = vunpack.c.l.b16 %v570
    %v706 = vunpack.c.l.b16 %v571
    %v707 = vunpack.c.l.b16 %v572
    %v708 = vunpack.c.l.b16 %v573
    %v709 = vunpack.c.l.b16 %v574
    %v710 = vunpack.c.l.b16 %v575
    %v711 = vunpack.c.l.b16 %v576
    %v712 = vunpack.c.l.b16 %v577
    %v713 = vunpack.c.l.b16 %v578
    %v714 = vunpack.c.l.b16 %v579
    %v715 = vunpack.c.l.b16 %v580
    %v716 = vunpack.c.l.b16 %v581
    %v717 = vunpack.c.l.b16 %v582
    %v718 = vunpack.c.l.b16 %v583
    %v719 = vunpack.c.l.b16 %v584
    %v720 = vunpack.c.l.b16 %v585
    %v721 = vunpack.c.l.b16 %v586
    %v722 = vunpack.c.l.b16 %v587
    %v723 = vunpack.c.l.b16 %v588
    %v724 = vunpack.c.l.b16 %v589
    %v725 = vunpack.c.l.b16 %v590
    %v726 = vunpack.c.l.b16 %v591
    %v727 = vunpack.c.l.b16 %v592
    %v728 = vunpack.c.l.b16 %v593
    %v729 = vunpack.c.l.b16 %v594
    %v730 = vunpack.c.l.b16 %v595
    %v731 = vunpack.c.l.b16 %v596
    %v732 = vunpack.c.l.b16 %v597
    %v733 = vunpack.c.l.b16 %v598
    %v734 = vunpack.c.l.b16 %v599
    %v735 = vunpack.c.l.b16 %v600
    %v736 = vunpack.c.l.b16 %v601
    %v737 = vunpack.c.l.b16 %v602
    %v738 = vunpack.c.l.b16 %v603
    %v739 = vunpack.c.l.b16 %v604
    %v740 = vunpack.c.l.b16 %v605
    %v741 = vunpack.c.l.b16 %v606
    %v742 = vunpack.c.l.b16 %v607
    %v743 = vunpack.c.l.b16 %v608
    %v744 = vunpack.c.l.b16 %v609
    %v745 = vunpack.c.l.b16 %v610
    %v746 = vunpack.c.l.b16 %v611
    %v747 = vunpack.c.l.b16 %v612
    %v748 = vunpack.c.l.b16 %v613
    %v749 = vunpack.c.l.b16 %v614
    %v750 = vunpack.c.l.b16 %v615
    %v751 = vpack.c.b16 %v688, %v687
    %v752 = vpack.c.b16 %v690, %v689
    %v753 = vpack.c.b16 %v692, %v691
    %v754 = vpack.c.b16 %v694, %v693
    %v755 = vpack.c.b16 %v696, %v695
    %v756 = vpack.c.b16 %v698, %v697
    %v757 = vpack.c.b16 %v700, %v699
    %v758 = vpack.c.b16 %v702, %v701
    %v759 = vpack.c.b16 %v704, %v703
    %v760 = vpack.c.b16 %v706, %v705
    %v761 = vpack.c.b16 %v708, %v707
    %v762 = vpack.c.b16 %v710, %v709
    %v763 = vpack.c.b16 %v712, %v711
    %v764 = vpack.c.b16 %v714, %v713
    %v765 = vpack.c.b16 %v716, %v715
    %v766 = vpack.c.b16 %v718, %v717
    %v767 = vpack.c.b16 %v720, %v719
    %v768 = vpack.c.b16 %v722, %v721
    %v769 = vpack.c.b16 %v724, %v723
    %v770 = vpack.c.b16 %v726, %v725
    %v771 = vpack.c.b16 %v728, %v727
    %v772 = vpack.c.b16 %v730, %v729
    %v773 = vpack.c.b16 %v732, %v731
    %v774 = vpack.c.b16 %v734, %v733
    %v775 = vpack.c.b16 %v736, %v735
    %v776 = vpack.c.b16 %v738, %v737
    %v777 = vpack.c.b16 %v740, %v739
    %v778 = vpack.c.b16 %v742, %v741
    %v779 = vpack.c.b16 %v744, %v743
    %v780 = vpack.c.b16 %v746, %v745
    %v781 = vpack.c.b16 %v748, %v747
    %v782 = vpack.c.b16 %v750, %v749
    %815 = vmatprep.subr.bf16.mxu0 0
    %816 = vmatpush1.bf16.msra.mxu0 %v758
    %817 = vmatprep.subr.bf16.mxu0 0
    %818 = vmatpush1.bf16.msra.mxu0 %v757
    %819 = vmatprep.subr.bf16.mxu0 0
    %820 = vmatpush1.bf16.msra.mxu0 %v756
    %821 = vmatprep.subr.bf16.mxu0 0
    %822 = vmatpush1.bf16.msra.mxu0 %v755
    %823 = vmatprep.subr.bf16.mxu0 0
    %824 = vmatpush1.bf16.msra.mxu0 %v754
    %825 = vmatprep.subr.bf16.mxu0 0
    %826 = vmatpush1.bf16.msra.mxu0 %v753
    %827 = vmatprep.subr.bf16.mxu0 0
    %828 = vmatpush1.bf16.msra.mxu0 %v752
    %829 = vmatprep.subr.bf16.mxu0 0
    %830 = vmatpush1.bf16.msra.mxu0 %v751
    %831 = vmatprep.subr.bf16.mxu0 0
    %832 = vmatpush2.bf16.msra.mxu0 %v766
    %833 = vmatprep.subr.bf16.mxu0 0
    %834 = vmatpush2.bf16.msra.mxu0 %v765
    %835 = vmatprep.subr.bf16.mxu0 0
    %836 = vmatpush2.bf16.msra.mxu0 %v764
    %837 = vmatprep.subr.bf16.mxu0 0
    %838 = vmatpush2.bf16.msra.mxu0 %v763
    %839 = vmatprep.subr.bf16.mxu0 0
    %840 = vmatpush2.bf16.msra.mxu0 %v762
    %841 = vmatprep.subr.bf16.mxu0 0
    %842 = vmatpush2.bf16.msra.mxu0 %v761
    %843 = vmatprep.subr.bf16.mxu0 0
    %844 = vmatpush2.bf16.msra.mxu0 %v760
    %845 = vmatprep.subr.bf16.mxu0 0
    %846 = vmatpush2.bf16.msra.mxu0 %v759
    %847 = vmatprep.mubr.bf16.mxu0 %v549
    %848 = vmatmul.mubr.bf16.gmra.mxu0 %v548
    %v849 = vpop.f32.mrf.mxu0
    %v850 = vadd.f32 %v621, %v849
    %v851 = vpop.f32.mrf.mxu0
    %v852 = vpop.f32.mrf.mxu0
    %v853 = vpop.f32.mrf.mxu0
    %854 = vdwg.mxu0
    %855 = vmatprep.subr.bf16.mxu0 0
    %856 = vmatpush1.bf16.msra.mxu0 %v774
    %857 = vmatprep.subr.bf16.mxu0 0
    %858 = vmatpush1.bf16.msra.mxu0 %v773
    %859 = vmatprep.subr.bf16.mxu0 0
    %860 = vmatpush1.bf16.msra.mxu0 %v772
    %861 = vmatprep.subr.bf16.mxu0 0
    %862 = vmatpush1.bf16.msra.mxu0 %v771
    %863 = vmatprep.subr.bf16.mxu0 0
    %864 = vmatpush1.bf16.msra.mxu0 %v770
    %865 = vmatprep.subr.bf16.mxu0 0
    %866 = vmatpush1.bf16.msra.mxu0 %v769
    %867 = vmatprep.subr.bf16.mxu0 0
    %868 = vmatpush1.bf16.msra.mxu0 %v768
    %869 = vmatprep.subr.bf16.mxu0 0
    %870 = vmatpush1.bf16.msra.mxu0 %v767
    %871 = vmatprep.subr.bf16.mxu0 0
    %872 = vmatpush2.bf16.msra.mxu0 %v782
    %873 = vmatprep.subr.bf16.mxu0 0
    %874 = vmatpush2.bf16.msra.mxu0 %v781
    %875 = vmatprep.subr.bf16.mxu0 0
    %876 = vmatpush2.bf16.msra.mxu0 %v780
    %877 = vmatprep.subr.bf16.mxu0 0
    %878 = vmatpush2.bf16.msra.mxu0 %v779
    %879 = vmatprep.subr.bf16.mxu0 0
    %880 = vmatpush2.bf16.msra.mxu0 %v778
    %881 = vmatprep.subr.bf16.mxu0 0
    %882 = vmatpush2.bf16.msra.mxu0 %v777
    %883 = vmatprep.subr.bf16.mxu0 0
    %884 = vmatpush2.bf16.msra.mxu0 %v776
    %885 = vmatprep.subr.bf16.mxu0 0
    %886 = vmatpush2.bf16.msra.mxu0 %v775
    %887 = vmatprep.mubr.bf16.mxu0 %v551
    %888 = vmatmul.mubr.bf16.gmra.mxu0 %v550
    %v889 = vpop.f32.mrf.mxu0
    %v890 = vadd.f32 %v850, %v889
    %v891 = vpop.f32.mrf.mxu0
    %v892 = vpop.f32.mrf.mxu0
    %v893 = vpop.f32.mrf.mxu0
    %894 = vdwg.mxu0
    %v895 = vmax.f32 %v890, 0.0
    %v896 = vpack.c.bf16 %v895, %v895
    %v897 = vld [vmem:[%s5] sm:$0xf]
    %v898 = vld [vmem:[%s5 + $0x4] sm:$0xf]
    %v899 = vld [vmem:[%s5 + $0x8] sm:$0xf]
    %v900 = vld [vmem:[%s5 + $0xc] sm:$0xf]
    %v901 = vld [vmem:[%s6] sm:$0x1]
    %v903 = vlaneseq
    %v904 = vshrl.u32 %v903, 7
    %v905 = vsub.s32 0, %v904
    %v906 = vrot.slane %v901, %v905
    %v912 = vunpack.c.l.b16 %v897
    %v913 = vunpack.c.l.b16 %v898
    %v914 = vunpack.c.l.b16 %v899
    %v915 = vunpack.c.l.b16 %v900
    %v916 = vpack.c.b16 %v913, %v912
    %v917 = vpack.c.b16 %v915, %v914
    %vm920 = vcmask 261120
    %v922 = vsel %vm920, %v896, 0
    %924 = vmatprep.subr.bf16.mxu0 0
    %925 = vmatpush1.bf16.msra.mxu0 0
    %926 = vmatprep.subr.bf16.mxu0 0
    %927 = vmatpush1.bf16.msra.mxu0 0
    %928 = vmatprep.subr.bf16.mxu0 0
    %929 = vmatpush1.bf16.msra.mxu0 0
    %930 = vmatprep.subr.bf16.mxu0 0
    %931 = vmatpush1.bf16.msra.mxu0 0
    %932 = vmatprep.subr.bf16.mxu0 0
    %933 = vmatpush1.bf16.msra.mxu0 0
    %934 = vmatprep.subr.bf16.mxu0 0
    %935 = vmatpush1.bf16.msra.mxu0 0
    %936 = vmatprep.subr.bf16.mxu0 0
    %937 = vmatpush1.bf16.msra.mxu0 %v917
    %938 = vmatprep.subr.bf16.mxu0 0
    %939 = vmatpush1.bf16.msra.mxu0 %v916
    %940 = vmatprep.subr.bf16.mxu0 0
    %941 = vmatpush2.bf16.msra.mxu0 0
    %942 = vmatprep.subr.bf16.mxu0 0
    %943 = vmatpush2.bf16.msra.mxu0 0
    %944 = vmatprep.subr.bf16.mxu0 0
    %945 = vmatpush2.bf16.msra.mxu0 0
    %946 = vmatprep.subr.bf16.mxu0 0
    %947 = vmatpush2.bf16.msra.mxu0 0
    %948 = vmatprep.subr.bf16.mxu0 0
    %949 = vmatpush2.bf16.msra.mxu0 0
    %950 = vmatprep.subr.bf16.mxu0 0
    %951 = vmatpush2.bf16.msra.mxu0 0
    %952 = vmatprep.subr.bf16.mxu0 0
    %953 = vmatpush2.bf16.msra.mxu0 0
    %954 = vmatprep.subr.bf16.mxu0 0
    %955 = vmatpush2.bf16.msra.mxu0 0
    %956 = vmatprep.mubr.bf16.mxu0 0
    %957 = vmatmul.mubr.bf16.gmra.mxu0 %v922
    %v958 = vpop.f32.mrf.mxu0
    %v959 = vadd.f32 %v906, %v958
    %v960 = vpop.f32.mrf.mxu0
    %v961 = vpop.f32.mrf.mxu0
    %v962 = vpop.f32.mrf.mxu0
    %963 = vdwg.mxu0
    %v964 = vmax.f32 %v959, 0.0
    %965 = vst [vmem:[#allocation5] sm:$0x3] %v964
    // Predicated region
    $region34: #{tpu_custom_call.1} parent=1 // pred_check
      _
    $region35: #{tpu_custom_call.1} parent=1 // pred_check_branch
      %967 = sbr.rel (0) target = $region37
    $region36: #{tpu_custom_call.1} parent=1 // pred_region
      %s969 = ssub.s32 32, 32
      %970 = vsyncadd [#allocation4], %s969
      %s972 = sshll.u32 [#allocation5], 4
      %s973 = int_to_ptr.vmem [resolvable:$true] %s972
      %975 = dma.vmem_to_hbm [thread:$0]  %s973, 32, %s7, [#allocation4]
    $region37: #{tpu_custom_call.1} parent=1 // pred_fallthru
      _
    // Predicated region
    $region38: #{tpu_custom_call.1} parent=1 // pred_check
      _
    $region39: #{tpu_custom_call.1} parent=1 // pred_check_branch
      %977 = sbr.rel (0) target = $region41
    $region40: #{tpu_custom_call.1} parent=1 // pred_region
      %978 = dma.done [#allocation4], 32
    $region41: #{tpu_custom_call.1} parent=1 // pred_fallthru
      _
    %979 = vsyncpa [#allocation3], 1
    %980 = vsyncpa [#allocation4], 1

// kernel: tpu_custom_call.1
$region0: #{tpu_custom_call.1}
  #allocation0 [shape = 'u32[]', space=smem, size = 0x4, offset = 0x4, fixed_abs, tag = 'smem constant byte address 0x4 - core index']
  #allocation1 [shape = 'u32[144,128]{1,0:T(1,128)}', space=vmem, size = 0x12000, scoped, tag = 'internal scratch']
  %s0 = inlined_call_operand.vmem [shape: f32[2,256], index: 0, kind: input, shape index: {}]
  %s1 = inlined_call_operand.hbm [shape: bf16[256,512], index: 1, kind: input, shape index: {}]
  %s2 = inlined_call_operand.vmem [shape: f32[1,512], index: 2, kind: input, shape index: {}]
  %s3 = inlined_call_operand.vmem [shape: bf16[512,32], index: 3, kind: input, shape index: {}]
  %s4 = inlined_call_operand.vmem [shape: f32[1,32], index: 4, kind: input, shape index: {}]
  %s5 = inlined_call_operand.vmem [shape: bf16[32,128], index: 5, kind: input, shape index: {}]
  %s6 = inlined_call_operand.vmem [shape: f32[1,128], index: 6, kind: input, shape index: {}]
  %s7 = inlined_call_operand.hbm [shape: f32[2,128], index: 7, kind: output, shape index: {}]
  %s8 = sld [smem:[#allocation0]]
  $region42: #{tpu_custom_call.1} parent=0
    _
  %s10 = ssub.s32 1, %s8
  %s11 = scalar_select 0, %s10, %s8
  $region1: #{tpu_custom_call.1} parent=0
    #allocation2 [shape = 'u8[262144]{0}', space=vmem, size = 0x40000, scoped, tag = 'input window, operand 1, single buffered']
    #allocation3 [shape = 's32[1]{0}', space=sflag, size = 0x4, scoped, tag = 'scoped memory for tpu_custom_call.1']
    #allocation4 [shape = 's32[1]{0}', space=sflag, size = 0x4, scoped, tag = 'scoped memory for tpu_custom_call.1']
    #allocation5 [shape = 'u8[1024]{0}', space=vmem, size = 0x400, scoped, tag = 'output window, operand 0, single buffered']
    %12 = vsyncpa [#allocation3], 0
    %13 = vsyncpa [#allocation4], 0
    // Predicated region
    $region2: #{tpu_custom_call.1} parent=1 // pred_check
      _
    $region3: #{tpu_custom_call.1} parent=1 // pred_check_branch
      %15 = sbr.rel (0) target = $region5
    $region4: #{tpu_custom_call.1} parent=1 // pred_region
      _
    $region5: #{tpu_custom_call.1} parent=1 // pred_fallthru
      _
    // Predicated region
    $region6: #{tpu_custom_call.1} parent=1 // pred_check
      _
    $region7: #{tpu_custom_call.1} parent=1 // pred_check_branch
      %17 = sbr.rel (0) target = $region9
    $region8: #{tpu_custom_call.1} parent=1 // pred_region
      %s19 = ssub.s32 8192, 8192
      %20 = vsyncadd [#allocation3], %s19
      %s21 = sshll.u32 [#allocation2], 4
      %s22 = int_to_ptr.vmem [resolvable:$true] %s21
      %27 = dma.hbm_to_vmem [thread:$0]  %s1, 8192, %s22, [#allocation3], 256, 256, 16
    $region9: #{tpu_custom_call.1} parent=1 // pred_fallthru
      _
    // Predicated region
    $region10: #{tpu_custom_call.1} parent=1 // pred_check
      _
    $region11: #{tpu_custom_call.1} parent=1 // pred_check_branch
      %29 = sbr.rel (0) target = $region13
    $region12: #{tpu_custom_call.1} parent=1 // pred_region
      _
    $region13: #{tpu_custom_call.1} parent=1 // pred_fallthru
      _
    // Predicated region
    $region14: #{tpu_custom_call.1} parent=1 // pred_check
      _
    $region15: #{tpu_custom_call.1} parent=1 // pred_check_branch
      %31 = sbr.rel (0) target = $region17
    $region16: #{tpu_custom_call.1} parent=1 // pred_region
      _
    $region17: #{tpu_custom_call.1} parent=1 // pred_fallthru
      _
    // Predicated region
    $region18: #{tpu_custom_call.1} parent=1 // pred_check
      _
    $region19: #{tpu_custom_call.1} parent=1 // pred_check_branch
      %33 = sbr.rel (0) target = $region21
    $region20: #{tpu_custom_call.1} parent=1 // pred_region
      _
    $region21: #{tpu_custom_call.1} parent=1 // pred_fallthru
      _
    // Predicated region
    $region22: #{tpu_custom_call.1} parent=1 // pred_check
      _
    $region23: #{tpu_custom_call.1} parent=1 // pred_check_branch
      %35 = sbr.rel (0) target = $region25
    $region24: #{tpu_custom_call.1} parent=1 // pred_region
      _
    $region25: #{tpu_custom_call.1} parent=1 // pred_fallthru
      _
    // Predicated region
    $region26: #{tpu_custom_call.1} parent=1 // pred_check
      _
    $region27: #{tpu_custom_call.1} parent=1 // pred_check_branch
      %37 = sbr.rel (0) target = $region29
    $region28: #{tpu_custom_call.1} parent=1 // pred_region
      _
    $region29: #{tpu_custom_call.1} parent=1 // pred_fallthru
      _
    // Predicated region
    $region30: #{tpu_custom_call.1} parent=1 // pred_check
      _
    $region31: #{tpu_custom_call.1} parent=1 // pred_check_branch
      %39 = sbr.rel (0) target = $region33
    $region32: #{tpu_custom_call.1} parent=1 // pred_region
      %40 = dma.done [#allocation3], 8192
    $region33: #{tpu_custom_call.1} parent=1 // pred_fallthru
      _
    %v42 = vld [vmem:[%s0] sm:$0xf]
    %v45 = vunpack.c.l.s4 1983009808
    %v46 = vunpack.c.0.s8 %v45
    %v47 = vlaneseq
    %v48 = vshrl.u32 %v47, 7
    %v49 = vsub.s32 %v46, %v48
    %v50 = vrot.slane %v42, %v49
    %v51 = vcombine.high %v50, %v50
    %v54 = vpack.c.bf16 %v50, %v50
    %v55 = vpack.c.bf16 %v51, %v51
    %v56 = vld [vmem:[#allocation2] sm:$0xff]
    %v57 = vld [vmem:[#allocation2 + $0x8] sm:$0xff]
    %v58 = vld [vmem:[#allocation2 + $0x10] sm:$0xff]
    %v59 = vld [vmem:[#allocation2 + $0x18] sm:$0xff]
    %v60 = vld [vmem:[#allocation2 + $0x20] sm:$0xff]
    %v61 = vld [vmem:[#allocation2 + $0x28] sm:$0xff]
    %v62 = vld [vmem:[#allocation2 + $0x30] sm:$0xff]
    %v63 = vld [vmem:[#allocation2 + $0x38] sm:$0xff]
    %v64 = vld [vmem:[#allocation2 + $0x40] sm:$0xff]
    %v65 = vld [vmem:[#allocation2 + $0x48] sm:$0xff]
    %v66 = vld [vmem:[#allocation2 + $0x50] sm:$0xff]
    %v67 = vld [vmem:[#allocation2 + $0x58] sm:$0xff]
    %v68 = vld [vmem:[#allocation2 + $0x60] sm:$0xff]
    %v69 = vld [vmem:[#allocation2 + $0x68] sm:$0xff]
    %v70 = vld [vmem:[#allocation2 + $0x70] sm:$0xff]
    %v71 = vld [vmem:[#allocation2 + $0x78] sm:$0xff]
    %v72 = vld [vmem:[#allocation2 + $0x80] sm:$0xff]
    %v73 = vld [vmem:[#allocation2 + $0x88] sm:$0xff]
    %v74 = vld [vmem:[#allocation2 + $0x90] sm:$0xff]
    %v75 = vld [vmem:[#allocation2 + $0x98] sm:$0xff]
    %v76 = vld [vmem:[#allocation2 + $0xa0] sm:$0xff]
    %v77 = vld [vmem:[#allocation2 + $0xa8] sm:$0xff]
    %v78 = vld [vmem:[#allocation2 + $0xb0] sm:$0xff]
    %v79 = vld [vmem:[#allocation2 + $0xb8] sm:$0xff]
    %v80 = vld [vmem:[#allocation2 + $0xc0] sm:$0xff]
    %v81 = vld [vmem:[#allocation2 + $0xc8] sm:$0xff]
    %v82 = vld [vmem:[#allocation2 + $0xd0] sm:$0xff]
    %v83 = vld [vmem:[#allocation2 + $0xd8] sm:$0xff]
    %v84 = vld [vmem:[#allocation2 + $0xe0] sm:$0xff]
    %v85 = vld [vmem:[#allocation2 + $0xe8] sm:$0xff]
    %v86 = vld [vmem:[#allocation2 + $0xf0] sm:$0xff]
    %v87 = vld [vmem:[#allocation2 + $0xf8] sm:$0xff]
    %v88 = vld [vmem:[#allocation2 + $0x100] sm:$0xff]
    %v89 = vld [vmem:[#allocation2 + $0x108] sm:$0xff]
    %v90 = vld [vmem:[#allocation2 + $0x110] sm:$0xff]
    %v91 = vld [vmem:[#allocation2 + $0x118] sm:$0xff]
    %v92 = vld [vmem:[#allocation2 + $0x120] sm:$0xff]
    %v93 = vld [vmem:[#allocation2 + $0x128] sm:$0xff]
    %v94 = vld [vmem:[#allocation2 + $0x130] sm:$0xff]
    %v95 = vld [vmem:[#allocation2 + $0x138] sm:$0xff]
    %v96 = vld [vmem:[#allocation2 + $0x140] sm:$0xff]
    %v97 = vld [vmem:[#allocation2 + $0x148] sm:$0xff]
    %v98 = vld [vmem:[#allocation2 + $0x150] sm:$0xff]
    %v99 = vld [vmem:[#allocation2 + $0x158] sm:$0xff]
    %v100 = vld [vmem:[#allocation2 + $0x160] sm:$0xff]
    %v101 = vld [vmem:[#allocation2 + $0x168] sm:$0xff]
    %v102 = vld [vmem:[#allocation2 + $0x170] sm:$0xff]
    %v103 = vld [vmem:[#allocation2 + $0x178] sm:$0xff]
    %v104 = vld [vmem:[#allocation2 + $0x180] sm:$0xff]
    %v105 = vld [vmem:[#allocation2 + $0x188] sm:$0xff]
    %v106 = vld [vmem:[#allocation2 + $0x190] sm:$0xff]
    %v107 = vld [vmem:[#allocation2 + $0x198] sm:$0xff]
    %v108 = vld [vmem:[#allocation2 + $0x1a0] sm:$0xff]
    %v109 = vld [vmem:[#allocation2 + $0x1a8] sm:$0xff]
    %v110 = vld [vmem:[#allocation2 + $0x1b0] sm:$0xff]
    %v111 = vld [vmem:[#allocation2 + $0x1b8] sm:$0xff]
    %v112 = vld [vmem:[#allocation2 + $0x1c0] sm:$0xff]
    %v113 = vld [vmem:[#allocation2 + $0x1c8] sm:$0xff]
    %v114 = vld [vmem:[#allocation2 + $0x1d0] sm:$0xff]
    %v115 = vld [vmem:[#allocation2 + $0x1d8] sm:$0xff]
    %v116 = vld [vmem:[#allocation2 + $0x1e0] sm:$0xff]
    %v117 = vld [vmem:[#allocation2 + $0x1e8] sm:$0xff]
    %v118 = vld [vmem:[#allocation2 + $0x1f0] sm:$0xff]
    %v119 = vld [vmem:[#allocation2 + $0x1f8] sm:$0xff]
    %v120 = vld [vmem:[%s2] sm:$0xf]
    %v122 = vlaneseq
    %v123 = vshrl.u32 %v122, 7
    %v124 = vsub.s32 0, %v123
    %v125 = vrot.slane %v120, %v124
    %v126 = vlaneseq
    %v127 = vshrl.u32 %v126, 7
    %v128 = vsub.s32 1, %v127
    %v129 = vrot.slane %v120, %v128
    %v130 = vlaneseq
    %v131 = vshrl.u32 %v130, 7
    %v132 = vsub.s32 2, %v131
    %v133 = vrot.slane %v120, %v132
    %v134 = vlaneseq
    %v135 = vshrl.u32 %v134, 7
    %v136 = vsub.s32 3, %v135
    %v137 = vrot.slane %v120, %v136
    %v206 = vunpack.c.l.b16 %v56
    %v207 = vunpack.c.h.b16 %v56
    %v208 = vunpack.c.l.b16 %v57
    %v209 = vunpack.c.h.b16 %v57
    %v210 = vunpack.c.l.b16 %v58
    %v211 = vunpack.c.h.b16 %v58
    %v212 = vunpack.c.l.b16 %v59
    %v213 = vunpack.c.h.b16 %v59
    %v214 = vunpack.c.l.b16 %v60
    %v215 = vunpack.c.h.b16 %v60
    %v216 = vunpack.c.l.b16 %v61
    %v217 = vunpack.c.h.b16 %v61
    %v218 = vunpack.c.l.b16 %v62
    %v219 = vunpack.c.h.b16 %v62
    %v220 = vunpack.c.l.b16 %v63
    %v221 = vunpack.c.h.b16 %v63
    %v222 = vunpack.c.l.b16 %v64
    %v223 = vunpack.c.h.b16 %v64
    %v224 = vunpack.c.l.b16 %v65
    %v225 = vunpack.c.h.b16 %v65
    %v226 = vunpack.c.l.b16 %v66
    %v227 = vunpack.c.h.b16 %v66
    %v228 = vunpack.c.l.b16 %v67
    %v229 = vunpack.c.h.b16 %v67
    %v230 = vunpack.c.l.b16 %v68
    %v231 = vunpack.c.h.b16 %v68
    %v232 = vunpack.c.l.b16 %v69
    %v233 = vunpack.c.h.b16 %v69
    %v234 = vunpack.c.l.b16 %v70
    %v235 = vunpack.c.h.b16 %v70
    %v236 = vunpack.c.l.b16 %v71
    %v237 = vunpack.c.h.b16 %v71
    %v238 = vunpack.c.l.b16 %v72
    %v239 = vunpack.c.h.b16 %v72
    %v240 = vunpack.c.l.b16 %v73
    %v241 = vunpack.c.h.b16 %v73
    %v242 = vunpack.c.l.b16 %v74
    %v243 = vunpack.c.h.b16 %v74
    %v244 = vunpack.c.l.b16 %v75
    %v245 = vunpack.c.h.b16 %v75
    %v246 = vunpack.c.l.b16 %v76
    %v247 = vunpack.c.h.b16 %v76
    %v248 = vunpack.c.l.b16 %v77
    %v249 = vunpack.c.h.b16 %v77
    %v250 = vunpack.c.l.b16 %v78
    %v251 = vunpack.c.h.b16 %v78
    %v252 = vunpack.c.l.b16 %v79
    %v253 = vunpack.c.h.b16 %v79
    %v254 = vunpack.c.l.b16 %v80
    %v255 = vunpack.c.h.b16 %v80
    %v256 = vunpack.c.l.b16 %v81
    %v257 = vunpack.c.h.b16 %v81
    %v258 = vunpack.c.l.b16 %v82
    %v259 = vunpack.c.h.b16 %v82
    %v260 = vunpack.c.l.b16 %v83
    %v261 = vunpack.c.h.b16 %v83
    %v262 = vunpack.c.l.b16 %v84
    %v263 = vunpack.c.h.b16 %v84
    %v264 = vunpack.c.l.b16 %v85
    %v265 = vunpack.c.h.b16 %v85
    %v266 = vunpack.c.l.b16 %v86
    %v267 = vunpack.c.h.b16 %v86
    %v268 = vunpack.c.l.b16 %v87
    %v269 = vunpack.c.h.b16 %v87
    %v270 = vunpack.c.l.b16 %v88
    %v271 = vunpack.c.h.b16 %v88
    %v272 = vunpack.c.l.b16 %v89
    %v273 = vunpack.c.h.b16 %v89
    %v274 = vunpack.c.l.b16 %v90
    %v275 = vunpack.c.h.b16 %v90
    %v276 = vunpack.c.l.b16 %v91
    %v277 = vunpack.c.h.b16 %v91
    %v278 = vunpack.c.l.b16 %v92
    %v279 = vunpack.c.h.b16 %v92
    %v280 = vunpack.c.l.b16 %v93
    %v281 = vunpack.c.h.b16 %v93
    %v282 = vunpack.c.l.b16 %v94
    %v283 = vunpack.c.h.b16 %v94
    %v284 = vunpack.c.l.b16 %v95
    %v285 = vunpack.c.h.b16 %v95
    %v286 = vunpack.c.l.b16 %v96
    %v287 = vunpack.c.h.b16 %v96
    %v288 = vunpack.c.l.b16 %v97
    %v289 = vunpack.c.h.b16 %v97
    %v290 = vunpack.c.l.b16 %v98
    %v291 = vunpack.c.h.b16 %v98
    %v292 = vunpack.c.l.b16 %v99
    %v293 = vunpack.c.h.b16 %v99
    %v294 = vunpack.c.l.b16 %v100
    %v295 = vunpack.c.h.b16 %v100
    %v296 = vunpack.c.l.b16 %v101
    %v297 = vunpack.c.h.b16 %v101
    %v298 = vunpack.c.l.b16 %v102
    %v299 = vunpack.c.h.b16 %v102
    %v300 = vunpack.c.l.b16 %v103
    %v301 = vunpack.c.h.b16 %v103
    %v302 = vunpack.c.l.b16 %v104
    %v303 = vunpack.c.h.b16 %v104
    %v304 = vunpack.c.l.b16 %v105
    %v305 = vunpack.c.h.b16 %v105
    %v306 = vunpack.c.l.b16 %v106
    %v307 = vunpack.c.h.b16 %v106
    %v308 = vunpack.c.l.b16 %v107
    %v309 = vunpack.c.h.b16 %v107
    %v310 = vunpack.c.l.b16 %v108
    %v311 = vunpack.c.h.b16 %v108
    %v312 = vunpack.c.l.b16 %v109
    %v313 = vunpack.c.h.b16 %v109
    %v314 = vunpack.c.l.b16 %v110
    %v315 = vunpack.c.h.b16 %v110
    %v316 = vunpack.c.l.b16 %v111
    %v317 = vunpack.c.h.b16 %v111
    %v318 = vunpack.c.l.b16 %v112
    %v319 = vunpack.c.h.b16 %v112
    %v320 = vunpack.c.l.b16 %v113
    %v321 = vunpack.c.h.b16 %v113
    %v322 = vunpack.c.l.b16 %v114
    %v323 = vunpack.c.h.b16 %v114
    %v324 = vunpack.c.l.b16 %v115
    %v325 = vunpack.c.h.b16 %v115
    %v326 = vunpack.c.l.b16 %v116
    %v327 = vunpack.c.h.b16 %v116
    %v328 = vunpack.c.l.b16 %v117
    %v329 = vunpack.c.h.b16 %v117
    %v330 = vunpack.c.l.b16 %v118
    %v331 = vunpack.c.h.b16 %v118
    %v332 = vunpack.c.l.b16 %v119
    %v333 = vunpack.c.h.b16 %v119
    %v334 = vpack.c.b16 %v210, %v206
    %v335 = vpack.c.b16 %v211, %v207
    %v336 = vpack.c.b16 %v212, %v208
    %v337 = vpack.c.b16 %v213, %v209
    %v338 = vpack.c.b16 %v218, %v214
    %v339 = vpack.c.b16 %v219, %v215
    %v340 = vpack.c.b16 %v220, %v216
    %v341 = vpack.c.b16 %v221, %v217
    %v342 = vpack.c.b16 %v226, %v222
    %v343 = vpack.c.b16 %v227, %v223
    %v344 = vpack.c.b16 %v228, %v224
    %v345 = vpack.c.b16 %v229, %v225
    %v346 = vpack.c.b16 %v234, %v230
    %v347 = vpack.c.b16 %v235, %v231
    %v348 = vpack.c.b16 %v236, %v232
    %v349 = vpack.c.b16 %v237, %v233
    %v350 = vpack.c.b16 %v242, %v238
    %v351 = vpack.c.b16 %v243, %v239
    %v352 = vpack.c.b16 %v244, %v240
    %v353 = vpack.c.b16 %v245, %v241
    %v354 = vpack.c.b16 %v250, %v246
    %v355 = vpack.c.b16 %v251, %v247
    %v356 = vpack.c.b16 %v252, %v248
    %v357 = vpack.c.b16 %v253, %v249
    %v358 = vpack.c.b16 %v258, %v254
    %v359 = vpack.c.b16 %v259, %v255
    %v360 = vpack.c.b16 %v260, %v256
    %v361 = vpack.c.b16 %v261, %v257
    %v362 = vpack.c.b16 %v266, %v262
    %v363 = vpack.c.b16 %v267, %v263
    %v364 = vpack.c.b16 %v268, %v264
    %v365 = vpack.c.b16 %v269, %v265
    %v366 = vpack.c.b16 %v274, %v270
    %v367 = vpack.c.b16 %v275, %v271
    %v368 = vpack.c.b16 %v276, %v272
    %v369 = vpack.c.b16 %v277, %v273
    %v370 = vpack.c.b16 %v282, %v278
    %v371 = vpack.c.b16 %v283, %v279
    %v372 = vpack.c.b16 %v284, %v280
    %v373 = vpack.c.b16 %v285, %v281
    %v374 = vpack.c.b16 %v290, %v286
    %v375 = vpack.c.b16 %v291, %v287
    %v376 = vpack.c.b16 %v292, %v288
    %v377 = vpack.c.b16 %v293, %v289
    %v378 = vpack.c.b16 %v298, %v294
    %v379 = vpack.c.b16 %v299, %v295
    %v380 = vpack.c.b16 %v300, %v296
    %v381 = vpack.c.b16 %v301, %v297
    %v382 = vpack.c.b16 %v306, %v302
    %v383 = vpack.c.b16 %v307, %v303
    %v384 = vpack.c.b16 %v308, %v304
    %v385 = vpack.c.b16 %v309, %v305
    %v386 = vpack.c.b16 %v314, %v310
    %v387 = vpack.c.b16 %v315, %v311
    %v388 = vpack.c.b16 %v316, %v312
    %v389 = vpack.c.b16 %v317, %v313
    %v390 = vpack.c.b16 %v322, %v318
    %v391 = vpack.c.b16 %v323, %v319
    %v392 = vpack.c.b16 %v324, %v320
    %v393 = vpack.c.b16 %v325, %v321
    %v394 = vpack.c.b16 %v330, %v326
    %v395 = vpack.c.b16 %v331, %v327
    %v396 = vpack.c.b16 %v332, %v328
    %v397 = vpack.c.b16 %v333, %v329
    %462 = vmatprep.subr.bf16.mxu0 %v363
    %463 = vmatpush1.bf16.msra.mxu0 %v362
    %464 = vmatprep.subr.bf16.mxu0 %v359
    %465 = vmatpush1.bf16.msra.mxu0 %v358
    %466 = vmatprep.subr.bf16.mxu0 %v355
    %467 = vmatpush1.bf16.msra.mxu0 %v354
    %468 = vmatprep.subr.bf16.mxu0 %v351
    %469 = vmatpush1.bf16.msra.mxu0 %v350
    %470 = vmatprep.subr.bf16.mxu0 %v347
    %471 = vmatpush1.bf16.msra.mxu0 %v346
    %472 = vmatprep.subr.bf16.mxu0 %v343
    %473 = vmatpush1.bf16.msra.mxu0 %v342
    %474 = vmatprep.subr.bf16.mxu0 %v339
    %475 = vmatpush1.bf16.msra.mxu0 %v338
    %476 = vmatprep.subr.bf16.mxu0 %v335
    %477 = vmatpush1.bf16.msra.mxu0 %v334
    %478 = vmatprep.subr.bf16.mxu0 %v395
    %479 = vmatpush2.bf16.msra.mxu0 %v394
    %480 = vmatprep.subr.bf16.mxu0 %v391
    %481 = vmatpush2.bf16.msra.mxu0 %v390
    %482 = vmatprep.subr.bf16.mxu0 %v387
    %483 = vmatpush2.bf16.msra.mxu0 %v386
    %484 = vmatprep.subr.bf16.mxu0 %v383
    %485 = vmatpush2.bf16.msra.mxu0 %v382
    %486 = vmatprep.subr.bf16.mxu0 %v379
    %487 = vmatpush2.bf16.msra.mxu0 %v378
    %488 = vmatprep.subr.bf16.mxu0 %v375
    %489 = vmatpush2.bf16.msra.mxu0 %v374
    %490 = vmatprep.subr.bf16.mxu0 %v371
    %491 = vmatpush2.bf16.msra.mxu0 %v370
    %492 = vmatprep.subr.bf16.mxu0 %v367
    %493 = vmatpush2.bf16.msra.mxu0 %v366
    %494 = vmatprep.mubr.bf16.mxu0 %v55
    %495 = vmatmul.mubr.bf16.gmra.mxu0 %v54
    %v496 = vpop.f32.mrf.mxu0
    %v497 = vadd.f32 %v125, %v496
    %v498 = vpop.f32.mrf.mxu0
    %v499 = vadd.f32 %v129, %v498
    %v500 = vpop.f32.mrf.mxu0
    %v501 = vpop.f32.mrf.mxu0
    %502 = vdwg.mxu0
    %503 = vmatprep.subr.bf16.mxu0 %v365
    %504 = vmatpush1.bf16.msra.mxu0 %v364
    %505 = vmatprep.subr.bf16.mxu0 %v361
    %506 = vmatpush1.bf16.msra.mxu0 %v360
    %507 = vmatprep.subr.bf16.mxu0 %v357
    %508 = vmatpush1.bf16.msra.mxu0 %v356
    %509 = vmatprep.subr.bf16.mxu0 %v353
    %510 = vmatpush1.bf16.msra.mxu0 %v352
    %511 = vmatprep.subr.bf16.mxu0 %v349
    %512 = vmatpush1.bf16.msra.mxu0 %v348
    %513 = vmatprep.subr.bf16.mxu0 %v345
    %514 = vmatpush1.bf16.msra.mxu0 %v344
    %515 = vmatprep.subr.bf16.mxu0 %v341
    %516 = vmatpush1.bf16.msra.mxu0 %v340
    %517 = vmatprep.subr.bf16.mxu0 %v337
    %518 = vmatpush1.bf16.msra.mxu0 %v336
    %519 = vmatprep.subr.bf16.mxu0 %v397
    %520 = vmatpush2.bf16.msra.mxu0 %v396
    %521 = vmatprep.subr.bf16.mxu0 %v393
    %522 = vmatpush2.bf16.msra.mxu0 %v392
    %523 = vmatprep.subr.bf16.mxu0 %v389
    %524 = vmatpush2.bf16.msra.mxu0 %v388
    %525 = vmatprep.subr.bf16.mxu0 %v385
    %526 = vmatpush2.bf16.msra.mxu0 %v384
    %527 = vmatprep.subr.bf16.mxu0 %v381
    %528 = vmatpush2.bf16.msra.mxu0 %v380
    %529 = vmatprep.subr.bf16.mxu0 %v377
    %530 = vmatpush2.bf16.msra.mxu0 %v376
    %531 = vmatprep.subr.bf16.mxu0 %v373
    %532 = vmatpush2.bf16.msra.mxu0 %v372
    %533 = vmatprep.subr.bf16.mxu0 %v369
    %534 = vmatpush2.bf16.msra.mxu0 %v368
    %535 = vmatprep.mubr.bf16.mxu0 %v55
    %536 = vmatmul.mubr.bf16.gmra.mxu0 %v54
    %v537 = vpop.f32.mrf.mxu0
    %v538 = vadd.f32 %v133, %v537
    %v539 = vpop.f32.mrf.mxu0
    %v540 = vadd.f32 %v137, %v539
    %v541 = vpop.f32.mrf.mxu0
    %v542 = vpop.f32.mrf.mxu0
    %543 = vdwg.mxu0
    %v544 = vmax.f32 %v497, 0.0
    %v545 = vmax.f32 %v499, 0.0
    %v546 = vmax.f32 %v538, 0.0
    %v547 = vmax.f32 %v540, 0.0
    %v548 = vpack.c.bf16 %v544, %v544
    %v549 = vpack.c.bf16 %v545, %v545
    %v550 = vpack.c.bf16 %v546, %v546
    %v551 = vpack.c.bf16 %v547, %v547
    %v552 = vld [vmem:[%s3] sm:$0xf]
    %v553 = vld [vmem:[%s3 + $0x4] sm:$0xf]
    %v554 = vld [vmem:[%s3 + $0x8] sm:$0xf]
    %v555 = vld [vmem:[%s3 + $0xc] sm:$0xf]
    %v556 = vld [vmem:[%s3 + $0x10] sm:$0xf]
    %v557 = vld [vmem:[%s3 + $0x14] sm:$0xf]
    %v558 = vld [vmem:[%s3 + $0x18] sm:$0xf]
    %v559 = vld [vmem:[%s3 + $0x1c] sm:$0xf]
    %v560 = vld [vmem:[%s3 + $0x20] sm:$0xf]
    %v561 = vld [vmem:[%s3 + $0x24] sm:$0xf]
    %v562 = vld [vmem:[%s3 + $0x28] sm:$0xf]
    %v563 = vld [vmem:[%s3 + $0x2c] sm:$0xf]
    %v564 = vld [vmem:[%s3 + $0x30] sm:$0xf]
    %v565 = vld [vmem:[%s3 + $0x34] sm:$0xf]
    %v566 = vld [vmem:[%s3 + $0x38] sm:$0xf]
    %v567 = vld [vmem:[%s3 + $0x3c] sm:$0xf]
    %v568 = vld [vmem:[%s3 + $0x40] sm:$0xf]
    %v569 = vld [vmem:[%s3 + $0x44] sm:$0xf]
    %v570 = vld [vmem:[%s3 + $0x48] sm:$0xf]
    %v571 = vld [vmem:[%s3 + $0x4c] sm:$0xf]
    %v572 = vld [vmem:[%s3 + $0x50] sm:$0xf]
    %v573 = vld [vmem:[%s3 + $0x54] sm:$0xf]
    %v574 = vld [vmem:[%s3 + $0x58] sm:$0xf]
    %v575 = vld [vmem:[%s3 + $0x5c] sm:$0xf]
    %v576 = vld [vmem:[%s3 + $0x60] sm:$0xf]
    %v577 = vld [vmem:[%s3 + $0x64] sm:$0xf]
    %v578 = vld [vmem:[%s3 + $0x68] sm:$0xf]
    %v579 = vld [vmem:[%s3 + $0x6c] sm:$0xf]
    %v580 = vld [vmem:[%s3 + $0x70] sm:$0xf]
    %v581 = vld [vmem:[%s3 + $0x74] sm:$0xf]
    %v582 = vld [vmem:[%s3 + $0x78] sm:$0xf]
    %v583 = vld [vmem:[%s3 + $0x7c] sm:$0xf]
    %v584 = vld [vmem:[%s3 + $0x80] sm:$0xf]
    %v585 = vld [vmem:[%s3 + $0x84] sm:$0xf]
    %v586 = vld [vmem:[%s3 + $0x88] sm:$0xf]
    %v587 = vld [vmem:[%s3 + $0x8c] sm:$0xf]
    %v588 = vld [vmem:[%s3 + $0x90] sm:$0xf]
    %v589 = vld [vmem:[%s3 + $0x94] sm:$0xf]
    %v590 = vld [vmem:[%s3 + $0x98] sm:$0xf]
    %v591 = vld [vmem:[%s3 + $0x9c] sm:$0xf]
    %v592 = vld [vmem:[%s3 + $0xa0] sm:$0xf]
    %v593 = vld [vmem:[%s3 + $0xa4] sm:$0xf]
    %v594 = vld [vmem:[%s3 + $0xa8] sm:$0xf]
    %v595 = vld [vmem:[%s3 + $0xac] sm:$0xf]
    %v596 = vld [vmem:[%s3 + $0xb0] sm:$0xf]
    %v597 = vld [vmem:[%s3 + $0xb4] sm:$0xf]
    %v598 = vld [vmem:[%s3 + $0xb8] sm:$0xf]
    %v599 = vld [vmem:[%s3 + $0xbc] sm:$0xf]
    %v600 = vld [vmem:[%s3 + $0xc0] sm:$0xf]
    %v601 = vld [vmem:[%s3 + $0xc4] sm:$0xf]
    %v602 = vld [vmem:[%s3 + $0xc8] sm:$0xf]
    %v603 = vld [vmem:[%s3 + $0xcc] sm:$0xf]
    %v604 = vld [vmem:[%s3 + $0xd0] sm:$0xf]
    %v605 = vld [vmem:[%s3 + $0xd4] sm:$0xf]
    %v606 = vld [vmem:[%s3 + $0xd8] sm:$0xf]
    %v607 = vld [vmem:[%s3 + $0xdc] sm:$0xf]
    %v608 = vld [vmem:[%s3 + $0xe0] sm:$0xf]
    %v609 = vld [vmem:[%s3 + $0xe4] sm:$0xf]
    %v610 = vld [vmem:[%s3 + $0xe8] sm:$0xf]
    %v611 = vld [vmem:[%s3 + $0xec] sm:$0xf]
    %v612 = vld [vmem:[%s3 + $0xf0] sm:$0xf]
    %v613 = vld [vmem:[%s3 + $0xf4] sm:$0xf]
    %v614 = vld [vmem:[%s3 + $0xf8] sm:$0xf]
    %v615 = vld [vmem:[%s3 + $0xfc] sm:$0xf]
    %v616 = vld [vmem:[%s4] sm:$0x1]
    %v618 = vlaneseq
    %v619 = vshrl.u32 %v618, 7
    %v620 = vsub.s32 0, %v619
    %v621 = vrot.slane %v616, %v620
    %v687 = vunpack.c.l.b16 %v552
    %v688 = vunpack.c.l.b16 %v553
    %v689 = vunpack.c.l.b16 %v554
    %v690 = vunpack.c.l.b16 %v555
    %v691 = vunpack.c.l.b16 %v556
    %v692 = vunpack.c.l.b16 %v557
    %v693 = vunpack.c.l.b16 %v558
    %v694 = vunpack.c.l.b16 %v559
    %v695 = vunpack.c.l.b16 %v560
    %v696 = vunpack.c.l.b16 %v561
    %v697 = vunpack.c.l.b16 %v562
    %v698 = vunpack.c.l.b16 %v563
    %v699 = vunpack.c.l.b16 %v564
    %v700 = vunpack.c.l.b16 %v565
    %v701 = vunpack.c.l.b16 %v566
    %v702 = vunpack.c.l.b16 %v567
    %v703 = vunpack.c.l.b16 %v568
    %v704 = vunpack.c.l.b16 %v569
    %v705 = vunpack.c.l.b16 %v570
    %v706 = vunpack.c.l.b16 %v571
    %v707 = vunpack.c.l.b16 %v572
    %v708 = vunpack.c.l.b16 %v573
    %v709 = vunpack.c.l.b16 %v574
    %v710 = vunpack.c.l.b16 %v575
    %v711 = vunpack.c.l.b16 %v576
    %v712 = vunpack.c.l.b16 %v577
    %v713 = vunpack.c.l.b16 %v578
    %v714 = vunpack.c.l.b16 %v579
    %v715 = vunpack.c.l.b16 %v580
    %v716 = vunpack.c.l.b16 %v581
    %v717 = vunpack.c.l.b16 %v582
    %v718 = vunpack.c.l.b16 %v583
    %v719 = vunpack.c.l.b16 %v584
    %v720 = vunpack.c.l.b16 %v585
    %v721 = vunpack.c.l.b16 %v586
    %v722 = vunpack.c.l.b16 %v587
    %v723 = vunpack.c.l.b16 %v588
    %v724 = vunpack.c.l.b16 %v589
    %v725 = vunpack.c.l.b16 %v590
    %v726 = vunpack.c.l.b16 %v591
    %v727 = vunpack.c.l.b16 %v592
    %v728 = vunpack.c.l.b16 %v593
    %v729 = vunpack.c.l.b16 %v594
    %v730 = vunpack.c.l.b16 %v595
    %v731 = vunpack.c.l.b16 %v596
    %v732 = vunpack.c.l.b16 %v597
    %v733 = vunpack.c.l.b16 %v598
    %v734 = vunpack.c.l.b16 %v599
    %v735 = vunpack.c.l.b16 %v600
    %v736 = vunpack.c.l.b16 %v601
    %v737 = vunpack.c.l.b16 %v602
    %v738 = vunpack.c.l.b16 %v603
    %v739 = vunpack.c.l.b16 %v604
    %v740 = vunpack.c.l.b16 %v605
    %v741 = vunpack.c.l.b16 %v606
    %v742 = vunpack.c.l.b16 %v607
    %v743 = vunpack.c.l.b16 %v608
    %v744 = vunpack.c.l.b16 %v609
    %v745 = vunpack.c.l.b16 %v610
    %v746 = vunpack.c.l.b16 %v611
    %v747 = vunpack.c.l.b16 %v612
    %v748 = vunpack.c.l.b16 %v613
    %v749 = vunpack.c.l.b16 %v614
    %v750 = vunpack.c.l.b16 %v615
    %v751 = vpack.c.b16 %v688, %v687
    %v752 = vpack.c.b16 %v690, %v689
    %v753 = vpack.c.b16 %v692, %v691
    %v754 = vpack.c.b16 %v694, %v693
    %v755 = vpack.c.b16 %v696, %v695
    %v756 = vpack.c.b16 %v698, %v697
    %v757 = vpack.c.b16 %v700, %v699
    %v758 = vpack.c.b16 %v702, %v701
    %v759 = vpack.c.b16 %v704, %v703
    %v760 = vpack.c.b16 %v706, %v705
    %v761 = vpack.c.b16 %v708, %v707
    %v762 = vpack.c.b16 %v710, %v709
    %v763 = vpack.c.b16 %v712, %v711
    %v764 = vpack.c.b16 %v714, %v713
    %v765 = vpack.c.b16 %v716, %v715
    %v766 = vpack.c.b16 %v718, %v717
    %v767 = vpack.c.b16 %v720, %v719
    %v768 = vpack.c.b16 %v722, %v721
    %v769 = vpack.c.b16 %v724, %v723
    %v770 = vpack.c.b16 %v726, %v725
    %v771 = vpack.c.b16 %v728, %v727
    %v772 = vpack.c.b16 %v730, %v729
    %v773 = vpack.c.b16 %v732, %v731
    %v774 = vpack.c.b16 %v734, %v733
    %v775 = vpack.c.b16 %v736, %v735
    %v776 = vpack.c.b16 %v738, %v737
    %v777 = vpack.c.b16 %v740, %v739
    %v778 = vpack.c.b16 %v742, %v741
    %v779 = vpack.c.b16 %v744, %v743
    %v780 = vpack.c.b16 %v746, %v745
    %v781 = vpack.c.b16 %v748, %v747
    %v782 = vpack.c.b16 %v750, %v749
    %815 = vmatprep.subr.bf16.mxu0 0
    %816 = vmatpush1.bf16.msra.mxu0 %v758
    %817 = vmatprep.subr.bf16.mxu0 0
    %818 = vmatpush1.bf16.msra.mxu0 %v757
    %819 = vmatprep.subr.bf16.mxu0 0
    %820 = vmatpush1.bf16.msra.mxu0 %v756
    %821 = vmatprep.subr.bf16.mxu0 0
    %822 = vmatpush1.bf16.msra.mxu0 %v755
    %823 = vmatprep.subr.bf16.mxu0 0
    %824 = vmatpush1.bf16.msra.mxu0 %v754
    %825 = vmatprep.subr.bf16.mxu0 0
    %826 = vmatpush1.bf16.msra.mxu0 %v753
    %827 = vmatprep.subr.bf16.mxu0 0
    %828 = vmatpush1.bf16.msra.mxu0 %v752
    %829 = vmatprep.subr.bf16.mxu0 0
    %830 = vmatpush1.bf16.msra.mxu0 %v751
    %831 = vmatprep.subr.bf16.mxu0 0
    %832 = vmatpush2.bf16.msra.mxu0 %v766
    %833 = vmatprep.subr.bf16.mxu0 0
    %834 = vmatpush2.bf16.msra.mxu0 %v765
    %835 = vmatprep.subr.bf16.mxu0 0
    %836 = vmatpush2.bf16.msra.mxu0 %v764
    %837 = vmatprep.subr.bf16.mxu0 0
    %838 = vmatpush2.bf16.msra.mxu0 %v763
    %839 = vmatprep.subr.bf16.mxu0 0
    %840 = vmatpush2.bf16.msra.mxu0 %v762
    %841 = vmatprep.subr.bf16.mxu0 0
    %842 = vmatpush2.bf16.msra.mxu0 %v761
    %843 = vmatprep.subr.bf16.mxu0 0
    %844 = vmatpush2.bf16.msra.mxu0 %v760
    %845 = vmatprep.subr.bf16.mxu0 0
    %846 = vmatpush2.bf16.msra.mxu0 %v759
    %847 = vmatprep.mubr.bf16.mxu0 %v549
    %848 = vmatmul.mubr.bf16.gmra.mxu0 %v548
    %v849 = vpop.f32.mrf.mxu0
    %v850 = vadd.f32 %v621, %v849
    %v851 = vpop.f32.mrf.mxu0
    %v852 = vpop.f32.mrf.mxu0
    %v853 = vpop.f32.mrf.mxu0
    %854 = vdwg.mxu0
    %855 = vmatprep.subr.bf16.mxu0 0
    %856 = vmatpush1.bf16.msra.mxu0 %v774
    %857 = vmatprep.subr.bf16.mxu0 0
    %858 = vmatpush1.bf16.msra.mxu0 %v773
    %859 = vmatprep.subr.bf16.mxu0 0
    %860 = vmatpush1.bf16.msra.mxu0 %v772
    %861 = vmatprep.subr.bf16.mxu0 0
    %862 = vmatpush1.bf16.msra.mxu0 %v771
    %863 = vmatprep.subr.bf16.mxu0 0
    %864 = vmatpush1.bf16.msra.mxu0 %v770
    %865 = vmatprep.subr.bf16.mxu0 0
    %866 = vmatpush1.bf16.msra.mxu0 %v769
    %867 = vmatprep.subr.bf16.mxu0 0
    %868 = vmatpush1.bf16.msra.mxu0 %v768
    %869 = vmatprep.subr.bf16.mxu0 0
    %870 = vmatpush1.bf16.msra.mxu0 %v767
    %871 = vmatprep.subr.bf16.mxu0 0
    %872 = vmatpush2.bf16.msra.mxu0 %v782
    %873 = vmatprep.subr.bf16.mxu0 0
    %874 = vmatpush2.bf16.msra.mxu0 %v781
    %875 = vmatprep.subr.bf16.mxu0 0
    %876 = vmatpush2.bf16.msra.mxu0 %v780
    %877 = vmatprep.subr.bf16.mxu0 0
    %878 = vmatpush2.bf16.msra.mxu0 %v779
    %879 = vmatprep.subr.bf16.mxu0 0
    %880 = vmatpush2.bf16.msra.mxu0 %v778
    %881 = vmatprep.subr.bf16.mxu0 0
    %882 = vmatpush2.bf16.msra.mxu0 %v777
    %883 = vmatprep.subr.bf16.mxu0 0
    %884 = vmatpush2.bf16.msra.mxu0 %v776
    %885 = vmatprep.subr.bf16.mxu0 0
    %886 = vmatpush2.bf16.msra.mxu0 %v775
    %887 = vmatprep.mubr.bf16.mxu0 %v551
    %888 = vmatmul.mubr.bf16.gmra.mxu0 %v550
    %v889 = vpop.f32.mrf.mxu0
    %v890 = vadd.f32 %v850, %v889
    %v891 = vpop.f32.mrf.mxu0
    %v892 = vpop.f32.mrf.mxu0
    %v893 = vpop.f32.mrf.mxu0
    %894 = vdwg.mxu0
    %v895 = vmax.f32 %v890, 0.0
    %v896 = vpack.c.bf16 %v895, %v895
    %v897 = vld [vmem:[%s5] sm:$0xf]
    %v898 = vld [vmem:[%s5 + $0x4] sm:$0xf]
    %v899 = vld [vmem:[%s5 + $0x8] sm:$0xf]
    %v900 = vld [vmem:[%s5 + $0xc] sm:$0xf]
    %v901 = vld [vmem:[%s6] sm:$0x1]
    %v903 = vlaneseq
    %v904 = vshrl.u32 %v903, 7
    %v905 = vsub.s32 0, %v904
    %v906 = vrot.slane %v901, %v905
    %v912 = vunpack.c.l.b16 %v897
    %v913 = vunpack.c.l.b16 %v898
    %v914 = vunpack.c.l.b16 %v899
    %v915 = vunpack.c.l.b16 %v900
    %v916 = vpack.c.b16 %v913, %v912
    %v917 = vpack.c.b16 %v915, %v914
    %vm920 = vcmask 261120
    %v922 = vsel %vm920, %v896, 0
    %924 = vmatprep.subr.bf16.mxu0 0
    %925 = vmatpush1.bf16.msra.mxu0 0
    %926 = vmatprep.subr.bf16.mxu0 0
    %927 = vmatpush1.bf16.msra.mxu0 0
    %928 = vmatprep.subr.bf16.mxu0 0
    %929 = vmatpush1.bf16.msra.mxu0 0
    %930 = vmatprep.subr.bf16.mxu0 0
    %931 = vmatpush1.bf16.msra.mxu0 0
    %932 = vmatprep.subr.bf16.mxu0 0
    %933 = vmatpush1.bf16.msra.mxu0 0
    %934 = vmatprep.subr.bf16.mxu0 0
    %935 = vmatpush1.bf16.msra.mxu0 0
    %936 = vmatprep.subr.bf16.mxu0 0
    %937 = vmatpush1.bf16.msra.mxu0 %v917
    %938 = vmatprep.subr.bf16.mxu0 0
    %939 = vmatpush1.bf16.msra.mxu0 %v916
    %940 = vmatprep.subr.bf16.mxu0 0
    %941 = vmatpush2.bf16.msra.mxu0 0
    %942 = vmatprep.subr.bf16.mxu0 0
    %943 = vmatpush2.bf16.msra.mxu0 0
    %944 = vmatprep.subr.bf16.mxu0 0
    %945 = vmatpush2.bf16.msra.mxu0 0
    %946 = vmatprep.subr.bf16.mxu0 0
    %947 = vmatpush2.bf16.msra.mxu0 0
    %948 = vmatprep.subr.bf16.mxu0 0
    %949 = vmatpush2.bf16.msra.mxu0 0
    %950 = vmatprep.subr.bf16.mxu0 0
    %951 = vmatpush2.bf16.msra.mxu0 0
    %952 = vmatprep.subr.bf16.mxu0 0
    %953 = vmatpush2.bf16.msra.mxu0 0
    %954 = vmatprep.subr.bf16.mxu0 0
    %955 = vmatpush2.bf16.msra.mxu0 0
    %956 = vmatprep.mubr.bf16.mxu0 0
    %957 = vmatmul.mubr.bf16.gmra.mxu0 %v922
    %v958 = vpop.f32.mrf.mxu0
    %v959 = vadd.f32 %v906, %v958
    %v960 = vpop.f32.mrf.mxu0
    %v961 = vpop.f32.mrf.mxu0
    %v962 = vpop.f32.mrf.mxu0
    %963 = vdwg.mxu0
    %v964 = vmax.f32 %v959, 0.0
    %965 = vst [vmem:[#allocation5] sm:$0x3] %v964
    // Predicated region
    $region34: #{tpu_custom_call.1} parent=1 // pred_check
      _
    $region35: #{tpu_custom_call.1} parent=1 // pred_check_branch
      %967 = sbr.rel (0) target = $region37
    $region36: #{tpu_custom_call.1} parent=1 // pred_region
      %s969 = ssub.s32 32, 32
      %970 = vsyncadd [#allocation4], %s969
      %s972 = sshll.u32 [#allocation5], 4
      %s973 = int_to_ptr.vmem [resolvable:$true] %s972
      %975 = dma.vmem_to_hbm [thread:$0]  %s973, 32, %s7, [#allocation4]
    $region37: #{tpu_custom_call.1} parent=1 // pred_fallthru
      _
    // Predicated region
    $region38: #{tpu_custom_call.1} parent=1 // pred_check
      _
    $region39: #{tpu_custom_call.1} parent=1 // pred_check_branch
      %977 = sbr.rel (0) target = $region41
    $region40: #{tpu_custom_call.1} parent=1 // pred_region
      %978 = dma.done [#allocation4], 32
    $region41: #{tpu_custom_call.1} parent=1 // pred_fallthru
      _
    %979 = vsyncpa [#allocation3], 1
    %980 = vsyncpa [#allocation4], 1

</llo_original>
